<compile_context>
chip_gen: v7x
topology: tpu7x:2x2x1
jax: 0.10.0
libtpu: 0.0.40
codegen_flags: <defaults>
</compile_context>

<pallas_src>
import functools

import jax
import jax.numpy as jnp
from jax.experimental import pallas as pl
from jax.experimental.pallas import tpu as pltpu


# bf16 on v6e/v7x gives ~4x MXU throughput; keep f32 on v5e / for strict parity.
MATMUL_DTYPE = jnp.float32

# Explicit scoped-VMEM budget: below v7x's 64 MiB physical, above v5e/v6e defaults.
_VMEM_LIMIT_BYTES = 48 * 1024 * 1024


def _const_spec(shape):
    """Full-array block, constant index map, single-buffered.

    The block index never changes across grid steps, so one resident VMEM copy is
    enough; pl.Buffered(1) avoids double-buffering the (potentially large) weights.
    """
    return pl.BlockSpec(shape, lambda n: (0,) * len(shape),
                        pipeline_mode=pl.Buffered(1))


# ----------------------- fused MHA + residual + LayerNorm -----------------------

def _mha_add_ln_kernel(*refs, nhead, eps, has_qpos):
    if has_qpos:
        (x_ref, qpos_ref, k_ref, v_ref,
         wq_ref, bq_ref, wk_ref, bk_ref, wv_ref, bv_ref,
         wo_ref, bo_ref, g_ref, b_ref, o_ref, attn_scr) = refs
    else:
        (x_ref, k_ref, v_ref,
         wq_ref, bq_ref, wk_ref, bk_ref, wv_ref, bv_ref,
         wo_ref, bo_ref, g_ref, b_ref, o_ref, attn_scr) = refs
        qpos_ref = None

    Lq, E = x_ref.shape
    Dh = E // nhead
    cd = MATMUL_DTYPE

    x = x_ref[...].astype(jnp.float32)                     # residual (f32)
    q_in = x + qpos_ref[...].astype(jnp.float32) if has_qpos else x

    # Fused projections: full-E contraction, E-wide output (good MXU shape).
    # 1/sqrt(Dh) is already folded into wq/bq (see prepare_params).
    q = jnp.dot(q_in.astype(cd), wq_ref[...].astype(cd),
                preferred_element_type=jnp.float32) + bq_ref[...]
    k = jnp.dot(k_ref[...].astype(cd), wk_ref[...].astype(cd),
                preferred_element_type=jnp.float32) + bk_ref[...]
    v = jnp.dot(v_ref[...].astype(cd), wv_ref[...].astype(cd),
                preferred_element_type=jnp.float32) + bv_ref[...]

    # Per-head attention.  Batch is handled by the grid, so the static unroll here
    # is only over nhead.  Scores contract the last dims of both operands (trans_b
    # form) -> no kh.T / XLU transpose.
    for h in range(nhead):
        c = slice(h * Dh, (h + 1) * Dh)
        s = jax.lax.dot_general(q[:, c].astype(cd), k[:, c].astype(cd),
                                (((1,), (1,)), ((), ())),
                                preferred_element_type=jnp.float32)    # (Lq, Lk)
        s = s - jnp.max(s, axis=-1, keepdims=True)
        p = jnp.exp(s)
        p = p * pl.reciprocal(jnp.sum(p, axis=-1, keepdims=True), approx=True)
        attn_scr[:, c] = jnp.dot(p.astype(cd), v[:, c].astype(cd),
                                 preferred_element_type=jnp.float32)   # (Lq, Dh)

    # ONE full-E output projection for all heads + residual.
    z = x + jnp.dot(attn_scr[...].astype(cd), wo_ref[...].astype(cd),
                    preferred_element_type=jnp.float32) + bo_ref[...]

    # LayerNorm (biased variance, matches PyTorch).
    mu = jnp.mean(z, axis=-1, keepdims=True)
    var = jnp.mean(jnp.square(z - mu), axis=-1, keepdims=True)
    o_ref[...] = ((z - mu) * jax.lax.rsqrt(var + eps) * g_ref[...]
                  + b_ref[...]).astype(o_ref.dtype)


def mha_add_ln_block(x2d, qpos2d, k2d, v2d, mp, ln_g, ln_b, *, nhead, n_batch, eps=1e-5):
    Mq, E = x2d.shape
    Mk = k2d.shape[0]
    Lq = Mq // n_batch
    Lk = Mk // n_batch
    has_qpos = qpos2d is not None

    q_tile = pl.BlockSpec((Lq, E), lambda n: (n, 0))
    k_tile = pl.BlockSpec((Lk, E), lambda n: (n, 0))

    inputs = [x2d] + ([qpos2d] if has_qpos else []) + [k2d, v2d]
    in_specs = [q_tile] + ([q_tile] if has_qpos else []) + [k_tile, k_tile]

    weights = [mp["wq"], mp["bq"], mp["wk"], mp["bk"], mp["wv"], mp["bv"],
               mp["wo"], mp["bo"], ln_g, ln_b]
    in_specs += [_const_spec(w.shape) for w in weights]

    return pl.pallas_call(
        functools.partial(_mha_add_ln_kernel, nhead=nhead, eps=eps, has_qpos=has_qpos),
        out_shape=jax.ShapeDtypeStruct((Mq, E), x2d.dtype),
        grid=(n_batch,),
        in_specs=in_specs,
        out_specs=pl.BlockSpec((Lq, E), lambda n: (n, 0)),
        scratch_shapes=[pltpu.VMEM((Lq, E), jnp.float32)],   # head-concat buffer
        compiler_params=pltpu.CompilerParams(
            dimension_semantics=("parallel",),
            vmem_limit_bytes=_VMEM_LIMIT_BYTES),
    )(*inputs, *weights)


# ----------------------- fused FFN + residual + LayerNorm -----------------------

def _ffn_add_ln_kernel(x_ref, w1_ref, b1_ref, w2_ref, b2_ref, g_ref, b_ref, o_ref, *, eps):
    cd = MATMUL_DTYPE
    x = x_ref[...].astype(jnp.float32)
    h = jnp.dot(x.astype(cd), w1_ref[...].astype(cd),
                preferred_element_type=jnp.float32) + b1_ref[...]
    h = jnp.maximum(h, 0.0)                          # relu
    y = jnp.dot(h.astype(cd), w2_ref[...].astype(cd),
                preferred_element_type=jnp.float32) + b2_ref[...]
    z = x + y                                        # residual
    mu = jnp.mean(z, axis=-1, keepdims=True)
    var = jnp.mean(jnp.square(z - mu), axis=-1, keepdims=True)
    o_ref[...] = ((z - mu) * jax.lax.rsqrt(var + eps) * g_ref[...]
                  + b_ref[...]).astype(o_ref.dtype)


def ffn_add_ln(x2d, w1, b1, w2, b2, g, b, *, eps=1e-5, block_m=None):
    M, E = x2d.shape
    if block_m is None:
        # Largest row tile <= 512 (512-row tiles reach ~85% of HBM roofline);
        # pl.cdiv handles a ragged final block — math is row-independent and
        # out-of-range rows of the last block are discarded on store.
        block_m = M if M <= 512 else 512
    row_spec = pl.BlockSpec((block_m, E), lambda i: (i, 0))
    return pl.pallas_call(
        functools.partial(_ffn_add_ln_kernel, eps=eps),
        out_shape=jax.ShapeDtypeStruct((M, E), x2d.dtype),
        grid=(pl.cdiv(M, block_m),),
        in_specs=[row_spec] + [_const_spec(w.shape) for w in (w1, b1, w2, b2, g, b)],
        out_specs=row_spec,
        compiler_params=pltpu.CompilerParams(
            dimension_semantics=("parallel",),
            vmem_limit_bytes=_VMEM_LIMIT_BYTES),
    )(x2d, w1, b1, w2, b2, g, b)


# -------------------- one-time parameter preparation (no per-call .T/.split) ------

def _prepare_mha(p, nhead, d_model):
    Dh = d_model // nhead
    scale = 1.0 / float(Dh) ** 0.5
    wq, wk, wv = jnp.split(p["in_proj_w"], 3, axis=0)   # PyTorch layout: rows = out
    bq, bk, bv = jnp.split(p["in_proj_b"], 3, axis=0)
    return {
        "wq": wq.T * scale, "bq": (bq * scale).reshape(1, d_model),
        "wk": wk.T,         "bk": bk.reshape(1, d_model),
        "wv": wv.T,         "bv": bv.reshape(1, d_model),
        "wo": p["out_proj_w"].T, "bo": p["out_proj_b"].reshape(1, d_model),
    }


def prepare_params(raw, nhead, d_model):
    E = d_model
    F = raw["w1"].shape[1]
    return {
        "self_attn": _prepare_mha(raw["self_attn"], nhead, E),
        "cross_attn": _prepare_mha(raw["cross_attn"], nhead, E),
        "w1": raw["w1"], "b1": raw["b1"].reshape(1, F),
        "w2": raw["w2"], "b2": raw["b2"].reshape(1, E),
        "ln1_g": raw["ln1_g"].reshape(1, E), "ln1_b": raw["ln1_b"].reshape(1, E),
        "ln2_g": raw["ln2_g"].reshape(1, E), "ln2_b": raw["ln2_b"].reshape(1, E),
        "ln3_g": raw["ln3_g"].reshape(1, E), "ln3_b": raw["ln3_b"].reshape(1, E),
    }


# ------------------------------ decoder layer forward -----------------------------

def decoder_layer_forward(tgt, memory, params, *, nhead, pos=None, query_pos=None):
    # tgt: (Lq, N, E), memory: (Lk, N, E)  -- PyTorch seq-first layout.
    Lq, N, E = tgt.shape

    def to2d(x):  # (L, N, E) -> batch-major (N*L, E), lane-dense E on the minor axis
        return jnp.transpose(x, (1, 0, 2)).reshape(x.shape[1] * x.shape[0], E)

    tgt2d = to2d(tgt)
    mem2d = to2d(memory)
    qpos2d = to2d(query_pos) if query_pos is not None else None
    k2d = mem2d + to2d(pos) if pos is not None else mem2d   # shared by both attn blocks

    # block 1: "self_attn" (queries = tgt + query_pos, keys = memory + pos, values = memory)
    t = mha_add_ln_block(tgt2d, qpos2d, k2d, mem2d, params["self_attn"],
                         params["ln1_g"], params["ln1_b"], nhead=nhead, n_batch=N)
    # block 2: cross attention
    t = mha_add_ln_block(t, qpos2d, k2d, mem2d, params["cross_attn"],
                         params["ln2_g"], params["ln2_b"], nhead=nhead, n_batch=N)
    # block 3: feed-forward
    t = ffn_add_ln(t, params["w1"], params["b1"], params["w2"], params["b2"],
                   params["ln3_g"], params["ln3_b"])
    return jnp.transpose(t.reshape(N, Lq, E), (1, 0, 2))


# ------------------------------- pure-JAX reference -------------------------------

def _ref_mha(query, key, value, p, nhead):
    Lq, N, E = query.shape
    Lk = key.shape[0]
    Dh = E // nhead
    wq, wk, wv = jnp.split(p["in_proj_w"], 3, axis=0)
    bq, bk, bv = jnp.split(p["in_proj_b"], 3, axis=0)
    q = query @ wq.T + bq
    k = key @ wk.T + bk
    v = value @ wv.T + bv
    qh = q.reshape(Lq, N, nhead, Dh).transpose(1, 2, 0, 3)
    kh = k.reshape(Lk, N, nhead, Dh).transpose(1, 2, 0, 3)
    vh = v.reshape(Lk, N, nhead, Dh).transpose(1, 2, 0, 3)
    s = jnp.einsum("nhqd,nhkd->nhqk", qh, kh) / jnp.sqrt(Dh).astype(jnp.float32)
    a = jax.nn.softmax(s, axis=-1)
    o = jnp.einsum("nhqk,nhkd->nhqd", a, vh)
    o = o.transpose(2, 0, 1, 3).reshape(Lq, N, E)
    return o @ p["out_proj_w"].T + p["out_proj_b"]


def _ref_ln(x, g, b, eps=1e-5):
    mu = jnp.mean(x, axis=-1, keepdims=True)
    var = jnp.mean(jnp.square(x - mu), axis=-1, keepdims=True)
    return (x - mu) * jax.lax.rsqrt(var + eps) * g + b


def _ref_forward(tgt, memory, params, nhead, pos, query_pos):
    q = tgt + query_pos
    k = memory + pos
    tgt2 = _ref_mha(q, k, memory, params["self_attn"], nhead)
    tgt = _ref_ln(tgt + tgt2, params["ln1_g"], params["ln1_b"])
    tgt2 = _ref_mha(tgt + query_pos, k, memory, params["cross_attn"], nhead)
    tgt = _ref_ln(tgt + tgt2, params["ln2_g"], params["ln2_b"])
    h = jnp.maximum(tgt @ params["w1"] + params["b1"], 0.0)
    tgt2 = h @ params["w2"] + params["b2"]
    return _ref_ln(tgt + tgt2, params["ln3_g"], params["ln3_b"])


# ----------------------------------------- main ------------------------------------

if __name__ == "__main__":
    d_model, nhead, dim_feedforward = 32, 4, 64
    L_tgt, L_mem, batch = 8, 16, 2

    key = jax.random.PRNGKey(0)
    ks = jax.random.split(key, 16)

    def nrm(k_, shape, scale=0.02):
        return (scale * jax.random.normal(k_, shape)).astype(jnp.float32)

    def mha_params(k1, k2, k3, k4):
        return {
            "in_proj_w": nrm(k1, (3 * d_model, d_model)),
            "in_proj_b": nrm(k2, (3 * d_model,)),
            "out_proj_w": nrm(k3, (d_model, d_model)),
            "out_proj_b": nrm(k4, (d_model,)),
        }

    raw_params = {
        "self_attn": mha_params(ks[0], ks[1], ks[2], ks[3]),
        "cross_attn": mha_params(ks[4], ks[5], ks[6], ks[7]),
        # FFN weights stored as (in, out) for x @ W
        "w1": nrm(ks[8], (d_model, dim_feedforward)),
        "b1": nrm(ks[9], (dim_feedforward,)),
        "w2": nrm(ks[10], (dim_feedforward, d_model)),
        "b2": nrm(ks[11], (d_model,)),
        "ln1_g": jnp.ones((d_model,), jnp.float32),
        "ln1_b": jnp.zeros((d_model,), jnp.float32),
        "ln2_g": jnp.ones((d_model,), jnp.float32),
        "ln2_b": jnp.zeros((d_model,), jnp.float32),
        "ln3_g": jnp.ones((d_model,), jnp.float32),
        "ln3_b": jnp.zeros((d_model,), jnp.float32),
    }

    tgt = jax.random.normal(ks[12], (L_tgt, batch, d_model), jnp.float32)
    memory = jax.random.normal(ks[13], (L_mem, batch, d_model), jnp.float32)
    pos = jax.random.normal(ks[14], (L_mem, batch, d_model), jnp.float32)
    query_pos = jax.random.normal(ks[15], (L_tgt, batch, d_model), jnp.float32)

    # one-time weight preparation (split / transpose / scale-fold)
    prepped = prepare_params(raw_params, nhead, d_model)

    fwd = jax.jit(decoder_layer_forward, static_argnames=("nhead",))
    out = fwd(tgt, memory, prepped, nhead=nhead, pos=pos, query_pos=query_pos)
    out = jax.block_until_ready(out)

    ref = _ref_forward(tgt, memory, raw_params, nhead, pos, query_pos)
    assert out.shape == (L_tgt, batch, d_model)
    # tolerance accommodates the EUP approximate reciprocal in the softmax normalization.
    assert jnp.allclose(out, ref, rtol=1e-3, atol=1e-3), "mismatch vs JAX reference"

    print("KERNEL_OK")
</pallas_src>

<mosaic_0001>
module attributes {stable_mosaic.version = 11 : i64} {
  func.func @_ffn_add_ln_kernel(%arg0: i32, %arg1: memref<16x32xf32, #tpu.memory_space<vmem>>, %arg2: memref<32x64xf32, #tpu.memory_space<vmem>>, %arg3: memref<1x64xf32, #tpu.memory_space<vmem>>, %arg4: memref<64x32xf32, #tpu.memory_space<vmem>>, %arg5: memref<1x32xf32, #tpu.memory_space<vmem>>, %arg6: memref<1x32xf32, #tpu.memory_space<vmem>>, %arg7: memref<1x32xf32, #tpu.memory_space<vmem>>, %arg8: memref<16x32xf32, #tpu.memory_space<vmem>>) attributes {dimension_semantics = [#tpu.dimension_semantics<parallel>], iteration_bounds = array<i64: 1>, scalar_prefetch = 0 : i64, scratch_operands = 0 : i64, tpu.core_type = #tpu.core_type<tc>, window_params = [{transform_indices = @transform_0, window_bounds = array<i64: 16, 32>}, {pipeline_mode = #tpu.pipeline_mode<synchronous>, transform_indices = @transform_1, window_bounds = array<i64: 32, 64>}, {pipeline_mode = #tpu.pipeline_mode<synchronous>, transform_indices = @transform_2, window_bounds = array<i64: 1, 64>}, {pipeline_mode = #tpu.pipeline_mode<synchronous>, transform_indices = @transform_3, window_bounds = array<i64: 64, 32>}, {pipeline_mode = #tpu.pipeline_mode<synchronous>, transform_indices = @transform_4, window_bounds = array<i64: 1, 32>}, {pipeline_mode = #tpu.pipeline_mode<synchronous>, transform_indices = @transform_5, window_bounds = array<i64: 1, 32>}, {pipeline_mode = #tpu.pipeline_mode<synchronous>, transform_indices = @transform_6, window_bounds = array<i64: 1, 32>}, {transform_indices = @transform_7, window_bounds = array<i64: 16, 32>}]} {
    %c0 = arith.constant 0 : index
    %c0_0 = arith.constant 0 : index
    %0 = vector.load %arg1[%c0, %c0_0] : memref<16x32xf32, #tpu.memory_space<vmem>>, vector<16x32xf32>
    %c0_1 = arith.constant 0 : index
    %c0_2 = arith.constant 0 : index
    %1 = vector.load %arg2[%c0_1, %c0_2] : memref<32x64xf32, #tpu.memory_space<vmem>>, vector<32x64xf32>
    %cst = arith.constant dense<0.000000e+00> : vector<16x64xf32>
    %2 = tpu.matmul %0, %1, %cst {dimension_numbers = #tpu.dot_dimension_numbers<[1], [0], [0], [1], [0, 0, 1, 1], [], []>} : vector<16x32xf32>, vector<32x64xf32>, vector<16x64xf32> -> vector<16x64xf32>
    %c0_3 = arith.constant 0 : index
    %c0_4 = arith.constant 0 : index
    %3 = vector.load %arg3[%c0_3, %c0_4] : memref<1x64xf32, #tpu.memory_space<vmem>>, vector<1x64xf32>
    %4 = vector.broadcast %3 : vector<1x64xf32> to vector<16x64xf32>
    %5 = arith.addf %2, %4 : vector<16x64xf32>
    %cst_5 = arith.constant 0.000000e+00 : f32
    %6 = vector.broadcast %cst_5 : f32 to vector<16x64xf32>
    %7 = arith.maximumf %5, %6 : vector<16x64xf32>
    %c0_6 = arith.constant 0 : index
    %c0_7 = arith.constant 0 : index
    %8 = vector.load %arg4[%c0_6, %c0_7] : memref<64x32xf32, #tpu.memory_space<vmem>>, vector<64x32xf32>
    %cst_8 = arith.constant dense<0.000000e+00> : vector<16x32xf32>
    %9 = tpu.matmul %7, %8, %cst_8 {dimension_numbers = #tpu.dot_dimension_numbers<[1], [0], [0], [1], [0, 0, 1, 1], [], []>} : vector<16x64xf32>, vector<64x32xf32>, vector<16x32xf32> -> vector<16x32xf32>
    %c0_9 = arith.constant 0 : index
    %c0_10 = arith.constant 0 : index
    %10 = vector.load %arg5[%c0_9, %c0_10] : memref<1x32xf32, #tpu.memory_space<vmem>>, vector<1x32xf32>
    %11 = vector.broadcast %10 : vector<1x32xf32> to vector<16x32xf32>
    %12 = arith.addf %9, %11 : vector<16x32xf32>
    %13 = arith.addf %0, %12 : vector<16x32xf32>
    %cst_11 = arith.constant dense<0.000000e+00> : vector<16xf32>
    %14 = vector.multi_reduction <add>, %13, %cst_11 [1] : vector<16x32xf32> to vector<16xf32>
    %15 = vector.shape_cast %14 : vector<16xf32> to vector<16x1xf32>
    %cst_12 = arith.constant 3.200000e+01 : f32
    %16 = vector.broadcast %cst_12 : f32 to vector<16x1xf32>
    %17 = arith.divf %15, %16 : vector<16x1xf32>
    %18 = vector.broadcast %17 : vector<16x1xf32> to vector<16x32xf32>
    %19 = arith.subf %13, %18 : vector<16x32xf32>
    %20 = arith.mulf %19, %19 : vector<16x32xf32>
    %cst_13 = arith.constant dense<0.000000e+00> : vector<16xf32>
    %21 = vector.multi_reduction <add>, %20, %cst_13 [1] : vector<16x32xf32> to vector<16xf32>
    %22 = vector.shape_cast %21 : vector<16xf32> to vector<16x1xf32>
    %cst_14 = arith.constant 3.200000e+01 : f32
    %23 = vector.broadcast %cst_14 : f32 to vector<16x1xf32>
    %24 = arith.divf %22, %23 : vector<16x1xf32>
    %25 = vector.broadcast %17 : vector<16x1xf32> to vector<16x32xf32>
    %26 = arith.subf %13, %25 : vector<16x32xf32>
    %cst_15 = arith.constant 9.99999974E-6 : f32
    %27 = vector.broadcast %cst_15 : f32 to vector<16x1xf32>
    %28 = arith.addf %24, %27 : vector<16x1xf32>
    %29 = math.rsqrt %28 : vector<16x1xf32>
    %30 = vector.broadcast %29 : vector<16x1xf32> to vector<16x32xf32>
    %31 = arith.mulf %26, %30 : vector<16x32xf32>
    %c0_16 = arith.constant 0 : index
    %c0_17 = arith.constant 0 : index
    %32 = vector.load %arg6[%c0_16, %c0_17] : memref<1x32xf32, #tpu.memory_space<vmem>>, vector<1x32xf32>
    %33 = vector.broadcast %32 : vector<1x32xf32> to vector<16x32xf32>
    %34 = arith.mulf %31, %33 : vector<16x32xf32>
    %c0_18 = arith.constant 0 : index
    %c0_19 = arith.constant 0 : index
    %35 = vector.load %arg7[%c0_18, %c0_19] : memref<1x32xf32, #tpu.memory_space<vmem>>, vector<1x32xf32>
    %36 = vector.broadcast %35 : vector<1x32xf32> to vector<16x32xf32>
    %37 = arith.addf %34, %36 : vector<16x32xf32>
    %c0_20 = arith.constant 0 : index
    %c0_21 = arith.constant 0 : index
    %38 = vector.load %arg8[%c0_20, %c0_21] : memref<16x32xf32, #tpu.memory_space<vmem>>, vector<16x32xf32>
    tpu.vector_store %arg8[%c0_20, %c0_21], %37 {strides = array<i32>} : memref<16x32xf32, #tpu.memory_space<vmem>>, vector<16x32xf32>,
    return
  }
  func.func @transform_0(%arg0: i32) -> (i32, i32) {
    %c0_i32 = arith.constant 0 : i32
    %c0_i32_0 = arith.constant 0 : i32
    return %arg0, %c0_i32 : i32, i32
  }
  func.func @transform_1(%arg0: i32) -> (i32, i32) {
    %c0_i32 = arith.constant 0 : i32
    %c0_i32_0 = arith.constant 0 : i32
    %c0_i32_1 = arith.constant 0 : i32
    return %c0_i32, %c0_i32_0 : i32, i32
  }
  func.func @transform_2(%arg0: i32) -> (i32, i32) {
    %c0_i32 = arith.constant 0 : i32
    %c0_i32_0 = arith.constant 0 : i32
    %c0_i32_1 = arith.constant 0 : i32
    return %c0_i32, %c0_i32_0 : i32, i32
  }
  func.func @transform_3(%arg0: i32) -> (i32, i32) {
    %c0_i32 = arith.constant 0 : i32
    %c0_i32_0 = arith.constant 0 : i32
    %c0_i32_1 = arith.constant 0 : i32
    return %c0_i32, %c0_i32_0 : i32, i32
  }
  func.func @transform_4(%arg0: i32) -> (i32, i32) {
    %c0_i32 = arith.constant 0 : i32
    %c0_i32_0 = arith.constant 0 : i32
    %c0_i32_1 = arith.constant 0 : i32
    return %c0_i32, %c0_i32_0 : i32, i32
  }
  func.func @transform_5(%arg0: i32) -> (i32, i32) {
    %c0_i32 = arith.constant 0 : i32
    %c0_i32_0 = arith.constant 0 : i32
    %c0_i32_1 = arith.constant 0 : i32
    return %c0_i32, %c0_i32_0 : i32, i32
  }
  func.func @transform_6(%arg0: i32) -> (i32, i32) {
    %c0_i32 = arith.constant 0 : i32
    %c0_i32_0 = arith.constant 0 : i32
    %c0_i32_1 = arith.constant 0 : i32
    return %c0_i32, %c0_i32_0 : i32, i32
  }
  func.func @transform_7(%arg0: i32) -> (i32, i32) {
    %c0_i32 = arith.constant 0 : i32
    %c0_i32_0 = arith.constant 0 : i32
    return %arg0, %c0_i32 : i32, i32
  }
}

module attributes {stable_mosaic.version = 11 : i64} {
  func.func @_mha_add_ln_kernel(%arg0: i32, %arg1: memref<8x32xf32, #tpu.memory_space<vmem>>, %arg2: memref<8x32xf32, #tpu.memory_space<vmem>>, %arg3: memref<16x32xf32, #tpu.memory_space<vmem>>, %arg4: memref<16x32xf32, #tpu.memory_space<vmem>>, %arg5: memref<32x32xf32, #tpu.memory_space<vmem>>, %arg6: memref<1x32xf32, #tpu.memory_space<vmem>>, %arg7: memref<32x32xf32, #tpu.memory_space<vmem>>, %arg8: memref<1x32xf32, #tpu.memory_space<vmem>>, %arg9: memref<32x32xf32, #tpu.memory_space<vmem>>, %arg10: memref<1x32xf32, #tpu.memory_space<vmem>>, %arg11: memref<32x32xf32, #tpu.memory_space<vmem>>, %arg12: memref<1x32xf32, #tpu.memory_space<vmem>>, %arg13: memref<1x32xf32, #tpu.memory_space<vmem>>, %arg14: memref<1x32xf32, #tpu.memory_space<vmem>>, %arg15: memref<8x32xf32, #tpu.memory_space<vmem>>, %arg16: memref<8x32xf32, #tpu.memory_space<vmem>>) attributes {dimension_semantics = [#tpu.dimension_semantics<parallel>], iteration_bounds = array<i64: 2>, scalar_prefetch = 0 : i64, scratch_operands = 1 : i64, tpu.core_type = #tpu.core_type<tc>, window_params = [{transform_indices = @transform_0, window_bounds = array<i64: 8, 32>}, {transform_indices = @transform_1, window_bounds = array<i64: 8, 32>}, {transform_indices = @transform_2, window_bounds = array<i64: 16, 32>}, {transform_indices = @transform_3, window_bounds = array<i64: 16, 32>}, {pipeline_mode = #tpu.pipeline_mode<synchronous>, transform_indices = @transform_4, window_bounds = array<i64: 32, 32>}, {pipeline_mode = #tpu.pipeline_mode<synchronous>, transform_indices = @transform_5, window_bounds = array<i64: 1, 32>}, {pipeline_mode = #tpu.pipeline_mode<synchronous>, transform_indices = @transform_6, window_bounds = array<i64: 32, 32>}, {pipeline_mode = #tpu.pipeline_mode<synchronous>, transform_indices = @transform_7, window_bounds = array<i64: 1, 32>}, {pipeline_mode = #tpu.pipeline_mode<synchronous>, transform_indices = @transform_8, window_bounds = array<i64: 32, 32>}, {pipeline_mode = #tpu.pipeline_mode<synchronous>, transform_indices = @transform_9, window_bounds = array<i64: 1, 32>}, {pipeline_mode = #tpu.pipeline_mode<synchronous>, transform_indices = @transform_10, window_bounds = array<i64: 32, 32>}, {pipeline_mode = #tpu.pipeline_mode<synchronous>, transform_indices = @transform_11, window_bounds = array<i64: 1, 32>}, {pipeline_mode = #tpu.pipeline_mode<synchronous>, transform_indices = @transform_12, window_bounds = array<i64: 1, 32>}, {pipeline_mode = #tpu.pipeline_mode<synchronous>, transform_indices = @transform_13, window_bounds = array<i64: 1, 32>}, {transform_indices = @transform_14, window_bounds = array<i64: 8, 32>}]} {
    %c0 = arith.constant 0 : index
    %c0_0 = arith.constant 0 : index
    %0 = vector.load %arg1[%c0, %c0_0] : memref<8x32xf32, #tpu.memory_space<vmem>>, vector<8x32xf32>
    %c0_1 = arith.constant 0 : index
    %c0_2 = arith.constant 0 : index
    %1 = vector.load %arg2[%c0_1, %c0_2] : memref<8x32xf32, #tpu.memory_space<vmem>>, vector<8x32xf32>
    %2 = arith.addf %0, %1 : vector<8x32xf32>
    %c0_3 = arith.constant 0 : index
    %c0_4 = arith.constant 0 : index
    %3 = vector.load %arg5[%c0_3, %c0_4] : memref<32x32xf32, #tpu.memory_space<vmem>>, vector<32x32xf32>
    %cst = arith.constant dense<0.000000e+00> : vector<8x32xf32>
    %4 = tpu.matmul %2, %3, %cst {dimension_numbers = #tpu.dot_dimension_numbers<[1], [0], [0], [1], [0, 0, 1, 1], [], []>} : vector<8x32xf32>, vector<32x32xf32>, vector<8x32xf32> -> vector<8x32xf32>
    %c0_5 = arith.constant 0 : index
    %c0_6 = arith.constant 0 : index
    %5 = vector.load %arg6[%c0_5, %c0_6] : memref<1x32xf32, #tpu.memory_space<vmem>>, vector<1x32xf32>
    %6 = vector.broadcast %5 : vector<1x32xf32> to vector<8x32xf32>
    %7 = arith.addf %4, %6 : vector<8x32xf32>
    %c0_7 = arith.constant 0 : index
    %c0_8 = arith.constant 0 : index
    %8 = vector.load %arg3[%c0_7, %c0_8] : memref<16x32xf32, #tpu.memory_space<vmem>>, vector<16x32xf32>
    %c0_9 = arith.constant 0 : index
    %c0_10 = arith.constant 0 : index
    %9 = vector.load %arg7[%c0_9, %c0_10] : memref<32x32xf32, #tpu.memory_space<vmem>>, vector<32x32xf32>
    %cst_11 = arith.constant dense<0.000000e+00> : vector<16x32xf32>
    %10 = tpu.matmul %8, %9, %cst_11 {dimension_numbers = #tpu.dot_dimension_numbers<[1], [0], [0], [1], [0, 0, 1, 1], [], []>} : vector<16x32xf32>, vector<32x32xf32>, vector<16x32xf32> -> vector<16x32xf32>
    %c0_12 = arith.constant 0 : index
    %c0_13 = arith.constant 0 : index
    %11 = vector.load %arg8[%c0_12, %c0_13] : memref<1x32xf32, #tpu.memory_space<vmem>>, vector<1x32xf32>
    %12 = vector.broadcast %11 : vector<1x32xf32> to vector<16x32xf32>
    %13 = arith.addf %10, %12 : vector<16x32xf32>
    %c0_14 = arith.constant 0 : index
    %c0_15 = arith.constant 0 : index
    %14 = vector.load %arg4[%c0_14, %c0_15] : memref<16x32xf32, #tpu.memory_space<vmem>>, vector<16x32xf32>
    %c0_16 = arith.constant 0 : index
    %c0_17 = arith.constant 0 : index
    %15 = vector.load %arg9[%c0_16, %c0_17] : memref<32x32xf32, #tpu.memory_space<vmem>>, vector<32x32xf32>
    %cst_18 = arith.constant dense<0.000000e+00> : vector<16x32xf32>
    %16 = tpu.matmul %14, %15, %cst_18 {dimension_numbers = #tpu.dot_dimension_numbers<[1], [0], [0], [1], [0, 0, 1, 1], [], []>} : vector<16x32xf32>, vector<32x32xf32>, vector<16x32xf32> -> vector<16x32xf32>
    %c0_19 = arith.constant 0 : index
    %c0_20 = arith.constant 0 : index
    %17 = vector.load %arg10[%c0_19, %c0_20] : memref<1x32xf32, #tpu.memory_space<vmem>>, vector<1x32xf32>
    %18 = vector.broadcast %17 : vector<1x32xf32> to vector<16x32xf32>
    %19 = arith.addf %16, %18 : vector<16x32xf32>
    %20 = vector.extract_strided_slice %7 {offsets = [0, 0], sizes = [8, 8], strides = [1, 1]} : vector<8x32xf32> to vector<8x8xf32>
    %21 = vector.extract_strided_slice %13 {offsets = [0, 0], sizes = [16, 8], strides = [1, 1]} : vector<16x32xf32> to vector<16x8xf32>
    %cst_21 = arith.constant dense<0.000000e+00> : vector<8x16xf32>
    %22 = tpu.matmul %20, %21, %cst_21 {dimension_numbers = #tpu.dot_dimension_numbers<[1], [1], [0], [0], [0, 0, 1, 0], [], []>} : vector<8x8xf32>, vector<16x8xf32>, vector<8x16xf32> -> vector<8x16xf32>
    %cst_22 = arith.constant dense<0xFF800000> : vector<8xf32>
    %23 = vector.multi_reduction <maximumf>, %22, %cst_22 [1] : vector<8x16xf32> to vector<8xf32>
    %24 = vector.shape_cast %23 : vector<8xf32> to vector<8x1xf32>
    %25 = vector.broadcast %24 : vector<8x1xf32> to vector<8x16xf32>
    %26 = arith.subf %22, %25 : vector<8x16xf32>
    %27 = math.exp %26 : vector<8x16xf32>
    %cst_23 = arith.constant dense<0.000000e+00> : vector<8xf32>
    %28 = vector.multi_reduction <add>, %27, %cst_23 [1] : vector<8x16xf32> to vector<8xf32>
    %29 = vector.shape_cast %28 : vector<8xf32> to vector<8x1xf32>
    %30 = tpu.reciprocal %29 {approx = true} : vector<8x1xf32> -> vector<8x1xf32>
    %31 = vector.broadcast %30 : vector<8x1xf32> to vector<8x16xf32>
    %32 = arith.mulf %27, %31 : vector<8x16xf32>
    %33 = vector.extract_strided_slice %19 {offsets = [0, 0], sizes = [16, 8], strides = [1, 1]} : vector<16x32xf32> to vector<16x8xf32>
    %cst_24 = arith.constant dense<0.000000e+00> : vector<8x8xf32>
    %34 = tpu.matmul %32, %33, %cst_24 {dimension_numbers = #tpu.dot_dimension_numbers<[1], [0], [0], [1], [0, 0, 1, 1], [], []>} : vector<8x16xf32>, vector<16x8xf32>, vector<8x8xf32> -> vector<8x8xf32>
    %c0_25 = arith.constant 0 : index
    %c0_26 = arith.constant 0 : index
    %35 = vector.load %arg16[%c0_25, %c0_26] : memref<8x32xf32, #tpu.memory_space<vmem>>, vector<8x8xf32>
    tpu.vector_store %arg16[%c0_25, %c0_26], %34 {strides = array<i32>} : memref<8x32xf32, #tpu.memory_space<vmem>>, vector<8x8xf32>,
    %36 = vector.extract_strided_slice %7 {offsets = [0, 8], sizes = [8, 8], strides = [1, 1]} : vector<8x32xf32> to vector<8x8xf32>
    %37 = vector.extract_strided_slice %13 {offsets = [0, 8], sizes = [16, 8], strides = [1, 1]} : vector<16x32xf32> to vector<16x8xf32>
    %cst_27 = arith.constant dense<0.000000e+00> : vector<8x16xf32>
    %38 = tpu.matmul %36, %37, %cst_27 {dimension_numbers = #tpu.dot_dimension_numbers<[1], [1], [0], [0], [0, 0, 1, 0], [], []>} : vector<8x8xf32>, vector<16x8xf32>, vector<8x16xf32> -> vector<8x16xf32>
    %cst_28 = arith.constant dense<0xFF800000> : vector<8xf32>
    %39 = vector.multi_reduction <maximumf>, %38, %cst_28 [1] : vector<8x16xf32> to vector<8xf32>
    %40 = vector.shape_cast %39 : vector<8xf32> to vector<8x1xf32>
    %41 = vector.broadcast %40 : vector<8x1xf32> to vector<8x16xf32>
    %42 = arith.subf %38, %41 : vector<8x16xf32>
    %43 = math.exp %42 : vector<8x16xf32>
    %cst_29 = arith.constant dense<0.000000e+00> : vector<8xf32>
    %44 = vector.multi_reduction <add>, %43, %cst_29 [1] : vector<8x16xf32> to vector<8xf32>
    %45 = vector.shape_cast %44 : vector<8xf32> to vector<8x1xf32>
    %46 = tpu.reciprocal %45 {approx = true} : vector<8x1xf32> -> vector<8x1xf32>
    %47 = vector.broadcast %46 : vector<8x1xf32> to vector<8x16xf32>
    %48 = arith.mulf %43, %47 : vector<8x16xf32>
    %49 = vector.extract_strided_slice %19 {offsets = [0, 8], sizes = [16, 8], strides = [1, 1]} : vector<16x32xf32> to vector<16x8xf32>
    %cst_30 = arith.constant dense<0.000000e+00> : vector<8x8xf32>
    %50 = tpu.matmul %48, %49, %cst_30 {dimension_numbers = #tpu.dot_dimension_numbers<[1], [0], [0], [1], [0, 0, 1, 1], [], []>} : vector<8x16xf32>, vector<16x8xf32>, vector<8x8xf32> -> vector<8x8xf32>
    %c0_31 = arith.constant 0 : index
    %c8 = arith.constant 8 : index
    %51 = vector.load %arg16[%c0_31, %c8] : memref<8x32xf32, #tpu.memory_space<vmem>>, vector<8x8xf32>
    tpu.vector_store %arg16[%c0_31, %c8], %50 {strides = array<i32>} : memref<8x32xf32, #tpu.memory_space<vmem>>, vector<8x8xf32>,
    %52 = vector.extract_strided_slice %7 {offsets = [0, 16], sizes = [8, 8], strides = [1, 1]} : vector<8x32xf32> to vector<8x8xf32>
    %53 = vector.extract_strided_slice %13 {offsets = [0, 16], sizes = [16, 8], strides = [1, 1]} : vector<16x32xf32> to vector<16x8xf32>
    %cst_32 = arith.constant dense<0.000000e+00> : vector<8x16xf32>
    %54 = tpu.matmul %52, %53, %cst_32 {dimension_numbers = #tpu.dot_dimension_numbers<[1], [1], [0], [0], [0, 0, 1, 0], [], []>} : vector<8x8xf32>, vector<16x8xf32>, vector<8x16xf32> -> vector<8x16xf32>
    %cst_33 = arith.constant dense<0xFF800000> : vector<8xf32>
    %55 = vector.multi_reduction <maximumf>, %54, %cst_33 [1] : vector<8x16xf32> to vector<8xf32>
    %56 = vector.shape_cast %55 : vector<8xf32> to vector<8x1xf32>
    %57 = vector.broadcast %56 : vector<8x1xf32> to vector<8x16xf32>
    %58 = arith.subf %54, %57 : vector<8x16xf32>
    %59 = math.exp %58 : vector<8x16xf32>
    %cst_34 = arith.constant dense<0.000000e+00> : vector<8xf32>
    %60 = vector.multi_reduction <add>, %59, %cst_34 [1] : vector<8x16xf32> to vector<8xf32>
    %61 = vector.shape_cast %60 : vector<8xf32> to vector<8x1xf32>
    %62 = tpu.reciprocal %61 {approx = true} : vector<8x1xf32> -> vector<8x1xf32>
    %63 = vector.broadcast %62 : vector<8x1xf32> to vector<8x16xf32>
    %64 = arith.mulf %59, %63 : vector<8x16xf32>
    %65 = vector.extract_strided_slice %19 {offsets = [0, 16], sizes = [16, 8], strides = [1, 1]} : vector<16x32xf32> to vector<16x8xf32>
    %cst_35 = arith.constant dense<0.000000e+00> : vector<8x8xf32>
    %66 = tpu.matmul %64, %65, %cst_35 {dimension_numbers = #tpu.dot_dimension_numbers<[1], [0], [0], [1], [0, 0, 1, 1], [], []>} : vector<8x16xf32>, vector<16x8xf32>, vector<8x8xf32> -> vector<8x8xf32>
    %c0_36 = arith.constant 0 : index
    %c16 = arith.constant 16 : index
    %67 = vector.load %arg16[%c0_36, %c16] : memref<8x32xf32, #tpu.memory_space<vmem>>, vector<8x8xf32>
    tpu.vector_store %arg16[%c0_36, %c16], %66 {strides = array<i32>} : memref<8x32xf32, #tpu.memory_space<vmem>>, vector<8x8xf32>,
    %68 = vector.extract_strided_slice %7 {offsets = [0, 24], sizes = [8, 8], strides = [1, 1]} : vector<8x32xf32> to vector<8x8xf32>
    %69 = vector.extract_strided_slice %13 {offsets = [0, 24], sizes = [16, 8], strides = [1, 1]} : vector<16x32xf32> to vector<16x8xf32>
    %cst_37 = arith.constant dense<0.000000e+00> : vector<8x16xf32>
    %70 = tpu.matmul %68, %69, %cst_37 {dimension_numbers = #tpu.dot_dimension_numbers<[1], [1], [0], [0], [0, 0, 1, 0], [], []>} : vector<8x8xf32>, vector<16x8xf32>, vector<8x16xf32> -> vector<8x16xf32>
    %cst_38 = arith.constant dense<0xFF800000> : vector<8xf32>
    %71 = vector.multi_reduction <maximumf>, %70, %cst_38 [1] : vector<8x16xf32> to vector<8xf32>
    %72 = vector.shape_cast %71 : vector<8xf32> to vector<8x1xf32>
    %73 = vector.broadcast %72 : vector<8x1xf32> to vector<8x16xf32>
    %74 = arith.subf %70, %73 : vector<8x16xf32>
    %75 = math.exp %74 : vector<8x16xf32>
    %cst_39 = arith.constant dense<0.000000e+00> : vector<8xf32>
    %76 = vector.multi_reduction <add>, %75, %cst_39 [1] : vector<8x16xf32> to vector<8xf32>
    %77 = vector.shape_cast %76 : vector<8xf32> to vector<8x1xf32>
    %78 = tpu.reciprocal %77 {approx = true} : vector<8x1xf32> -> vector<8x1xf32>
    %79 = vector.broadcast %78 : vector<8x1xf32> to vector<8x16xf32>
    %80 = arith.mulf %75, %79 : vector<8x16xf32>
    %81 = vector.extract_strided_slice %19 {offsets = [0, 24], sizes = [16, 8], strides = [1, 1]} : vector<16x32xf32> to vector<16x8xf32>
    %cst_40 = arith.constant dense<0.000000e+00> : vector<8x8xf32>
    %82 = tpu.matmul %80, %81, %cst_40 {dimension_numbers = #tpu.dot_dimension_numbers<[1], [0], [0], [1], [0, 0, 1, 1], [], []>} : vector<8x16xf32>, vector<16x8xf32>, vector<8x8xf32> -> vector<8x8xf32>
    %c0_41 = arith.constant 0 : index
    %c24 = arith.constant 24 : index
    %83 = vector.load %arg16[%c0_41, %c24] : memref<8x32xf32, #tpu.memory_space<vmem>>, vector<8x8xf32>
    tpu.vector_store %arg16[%c0_41, %c24], %82 {strides = array<i32>} : memref<8x32xf32, #tpu.memory_space<vmem>>, vector<8x8xf32>,
    %c0_42 = arith.constant 0 : index
    %c0_43 = arith.constant 0 : index
    %84 = vector.load %arg16[%c0_42, %c0_43] : memref<8x32xf32, #tpu.memory_space<vmem>>, vector<8x32xf32>
    %c0_44 = arith.constant 0 : index
    %c0_45 = arith.constant 0 : index
    %85 = vector.load %arg11[%c0_44, %c0_45] : memref<32x32xf32, #tpu.memory_space<vmem>>, vector<32x32xf32>
    %cst_46 = arith.constant dense<0.000000e+00> : vector<8x32xf32>
    %86 = tpu.matmul %84, %85, %cst_46 {dimension_numbers = #tpu.dot_dimension_numbers<[1], [0], [0], [1], [0, 0, 1, 1], [], []>} : vector<8x32xf32>, vector<32x32xf32>, vector<8x32xf32> -> vector<8x32xf32>
    %87 = arith.addf %0, %86 : vector<8x32xf32>
    %c0_47 = arith.constant 0 : index
    %c0_48 = arith.constant 0 : index
    %88 = vector.load %arg12[%c0_47, %c0_48] : memref<1x32xf32, #tpu.memory_space<vmem>>, vector<1x32xf32>
    %89 = vector.broadcast %88 : vector<1x32xf32> to vector<8x32xf32>
    %90 = arith.addf %87, %89 : vector<8x32xf32>
    %cst_49 = arith.constant dense<0.000000e+00> : vector<8xf32>
    %91 = vector.multi_reduction <add>, %90, %cst_49 [1] : vector<8x32xf32> to vector<8xf32>
    %92 = vector.shape_cast %91 : vector<8xf32> to vector<8x1xf32>
    %cst_50 = arith.constant 3.200000e+01 : f32
    %93 = vector.broadcast %cst_50 : f32 to vector<8x1xf32>
    %94 = arith.divf %92, %93 : vector<8x1xf32>
    %95 = vector.broadcast %94 : vector<8x1xf32> to vector<8x32xf32>
    %96 = arith.subf %90, %95 : vector<8x32xf32>
    %97 = arith.mulf %96, %96 : vector<8x32xf32>
    %cst_51 = arith.constant dense<0.000000e+00> : vector<8xf32>
    %98 = vector.multi_reduction <add>, %97, %cst_51 [1] : vector<8x32xf32> to vector<8xf32>
    %99 = vector.shape_cast %98 : vector<8xf32> to vector<8x1xf32>
    %cst_52 = arith.constant 3.200000e+01 : f32
    %100 = vector.broadcast %cst_52 : f32 to vector<8x1xf32>
    %101 = arith.divf %99, %100 : vector<8x1xf32>
    %102 = vector.broadcast %94 : vector<8x1xf32> to vector<8x32xf32>
    %103 = arith.subf %90, %102 : vector<8x32xf32>
    %cst_53 = arith.constant 9.99999974E-6 : f32
    %104 = vector.broadcast %cst_53 : f32 to vector<8x1xf32>
    %105 = arith.addf %101, %104 : vector<8x1xf32>
    %106 = math.rsqrt %105 : vector<8x1xf32>
    %107 = vector.broadcast %106 : vector<8x1xf32> to vector<8x32xf32>
    %108 = arith.mulf %103, %107 : vector<8x32xf32>
    %c0_54 = arith.constant 0 : index
    %c0_55 = arith.constant 0 : index
    %109 = vector.load %arg13[%c0_54, %c0_55] : memref<1x32xf32, #tpu.memory_space<vmem>>, vector<1x32xf32>
    %110 = vector.broadcast %109 : vector<1x32xf32> to vector<8x32xf32>
    %111 = arith.mulf %108, %110 : vector<8x32xf32>
    %c0_56 = arith.constant 0 : index
    %c0_57 = arith.constant 0 : index
    %112 = vector.load %arg14[%c0_56, %c0_57] : memref<1x32xf32, #tpu.memory_space<vmem>>, vector<1x32xf32>
    %113 = vector.broadcast %112 : vector<1x32xf32> to vector<8x32xf32>
    %114 = arith.addf %111, %113 : vector<8x32xf32>
    %c0_58 = arith.constant 0 : index
    %c0_59 = arith.constant 0 : index
    %115 = vector.load %arg15[%c0_58, %c0_59] : memref<8x32xf32, #tpu.memory_space<vmem>>, vector<8x32xf32>
    tpu.vector_store %arg15[%c0_58, %c0_59], %114 {strides = array<i32>} : memref<8x32xf32, #tpu.memory_space<vmem>>, vector<8x32xf32>,
    return
  }
  func.func @transform_0(%arg0: i32) -> (i32, i32) {
    %c0_i32 = arith.constant 0 : i32
    %c0_i32_0 = arith.constant 0 : i32
    return %arg0, %c0_i32 : i32, i32
  }
  func.func @transform_1(%arg0: i32) -> (i32, i32) {
    %c0_i32 = arith.constant 0 : i32
    %c0_i32_0 = arith.constant 0 : i32
    return %arg0, %c0_i32 : i32, i32
  }
  func.func @transform_2(%arg0: i32) -> (i32, i32) {
    %c0_i32 = arith.constant 0 : i32
    %c0_i32_0 = arith.constant 0 : i32
    return %arg0, %c0_i32 : i32, i32
  }
  func.func @transform_3(%arg0: i32) -> (i32, i32) {
    %c0_i32 = arith.constant 0 : i32
    %c0_i32_0 = arith.constant 0 : i32
    return %arg0, %c0_i32 : i32, i32
  }
  func.func @transform_4(%arg0: i32) -> (i32, i32) {
    %c0_i32 = arith.constant 0 : i32
    %c0_i32_0 = arith.constant 0 : i32
    %c0_i32_1 = arith.constant 0 : i32
    return %c0_i32, %c0_i32_0 : i32, i32
  }
  func.func @transform_5(%arg0: i32) -> (i32, i32) {
    %c0_i32 = arith.constant 0 : i32
    %c0_i32_0 = arith.constant 0 : i32
    %c0_i32_1 = arith.constant 0 : i32
    return %c0_i32, %c0_i32_0 : i32, i32
  }
  func.func @transform_6(%arg0: i32) -> (i32, i32) {
    %c0_i32 = arith.constant 0 : i32
    %c0_i32_0 = arith.constant 0 : i32
    %c0_i32_1 = arith.constant 0 : i32
    return %c0_i32, %c0_i32_0 : i32, i32
  }
  func.func @transform_7(%arg0: i32) -> (i32, i32) {
    %c0_i32 = arith.constant 0 : i32
    %c0_i32_0 = arith.constant 0 : i32
    %c0_i32_1 = arith.constant 0 : i32
    return %c0_i32, %c0_i32_0 : i32, i32
  }
  func.func @transform_8(%arg0: i32) -> (i32, i32) {
    %c0_i32 = arith.constant 0 : i32
    %c0_i32_0 = arith.constant 0 : i32
    %c0_i32_1 = arith.constant 0 : i32
    return %c0_i32, %c0_i32_0 : i32, i32
  }
  func.func @transform_9(%arg0: i32) -> (i32, i32) {
    %c0_i32 = arith.constant 0 : i32
    %c0_i32_0 = arith.constant 0 : i32
    %c0_i32_1 = arith.constant 0 : i32
    return %c0_i32, %c0_i32_0 : i32, i32
  }
  func.func @transform_10(%arg0: i32) -> (i32, i32) {
    %c0_i32 = arith.constant 0 : i32
    %c0_i32_0 = arith.constant 0 : i32
    %c0_i32_1 = arith.constant 0 : i32
    return %c0_i32, %c0_i32_0 : i32, i32
  }
  func.func @transform_11(%arg0: i32) -> (i32, i32) {
    %c0_i32 = arith.constant 0 : i32
    %c0_i32_0 = arith.constant 0 : i32
    %c0_i32_1 = arith.constant 0 : i32
    return %c0_i32, %c0_i32_0 : i32, i32
  }
  func.func @transform_12(%arg0: i32) -> (i32, i32) {
    %c0_i32 = arith.constant 0 : i32
    %c0_i32_0 = arith.constant 0 : i32
    %c0_i32_1 = arith.constant 0 : i32
    return %c0_i32, %c0_i32_0 : i32, i32
  }
  func.func @transform_13(%arg0: i32) -> (i32, i32) {
    %c0_i32 = arith.constant 0 : i32
    %c0_i32_0 = arith.constant 0 : i32
    %c0_i32_1 = arith.constant 0 : i32
    return %c0_i32, %c0_i32_0 : i32, i32
  }
  func.func @transform_14(%arg0: i32) -> (i32, i32) {
    %c0_i32 = arith.constant 0 : i32
    %c0_i32_0 = arith.constant 0 : i32
    return %arg0, %c0_i32 : i32, i32
  }
}

</mosaic_0001>

<llo_original>
// kernel: decoder_layer_forward.5
$region0: #{decoder_layer_forward.5}
  #allocation0 [shape = 'u32[]', space=smem, size = 0x4, offset = 0x4, fixed_abs, tag = 'smem constant byte address 0x4 - core index']
  #allocation1 [shape = 'u32[144,128]{1,0:T(1,128)}', space=vmem, size = 0x12000, scoped, tag = 'internal scratch']
  %s0 = inlined_call_operand.vmem [shape: f32[16,32], index: 0, kind: input, shape index: {}]
  %s1 = inlined_call_operand.vmem [shape: f32[32,64], index: 1, kind: input, shape index: {}]
  %s2 = inlined_call_operand.vmem [shape: f32[1,64], index: 2, kind: input, shape index: {}]
  %s3 = inlined_call_operand.vmem [shape: f32[64,32], index: 3, kind: input, shape index: {}]
  %s4 = inlined_call_operand.vmem [shape: f32[1,32], index: 4, kind: input, shape index: {}]
  %s5 = inlined_call_operand.vmem [shape: f32[1,32], index: 5, kind: input, shape index: {}]
  %s6 = inlined_call_operand.vmem [shape: f32[1,32], index: 6, kind: input, shape index: {}]
  %s7 = inlined_call_operand.vmem [shape: f32[16,32], index: 7, kind: output, shape index: {}]
  %s8 = sld [smem:[#allocation0]]
  $region38: #{decoder_layer_forward.5} parent=0
    _
  %s10 = ssub.s32 1, %s8
  %s11 = scalar_select 0, %s10, %s8
  // Predicated region
  $region2: #{decoder_layer_forward.5} parent=0 // pred_check
    _
  $region3: #{decoder_layer_forward.5} parent=0 // pred_check_branch
    %13 = sbr.rel (0) target = $region5
  $region4: #{decoder_layer_forward.5} parent=0 // pred_region
    _
  $region5: #{decoder_layer_forward.5} parent=0 // pred_fallthru
    _
  // Predicated region
  $region6: #{decoder_layer_forward.5} parent=0 // pred_check
    _
  $region7: #{decoder_layer_forward.5} parent=0 // pred_check_branch
    %15 = sbr.rel (0) target = $region9
  $region8: #{decoder_layer_forward.5} parent=0 // pred_region
    _
  $region9: #{decoder_layer_forward.5} parent=0 // pred_fallthru
    _
  // Predicated region
  $region10: #{decoder_layer_forward.5} parent=0 // pred_check
    _
  $region11: #{decoder_layer_forward.5} parent=0 // pred_check_branch
    %17 = sbr.rel (0) target = $region13
  $region12: #{decoder_layer_forward.5} parent=0 // pred_region
    _
  $region13: #{decoder_layer_forward.5} parent=0 // pred_fallthru
    _
  // Predicated region
  $region14: #{decoder_layer_forward.5} parent=0 // pred_check
    _
  $region15: #{decoder_layer_forward.5} parent=0 // pred_check_branch
    %19 = sbr.rel (0) target = $region17
  $region16: #{decoder_layer_forward.5} parent=0 // pred_region
    _
  $region17: #{decoder_layer_forward.5} parent=0 // pred_fallthru
    _
  // Predicated region
  $region18: #{decoder_layer_forward.5} parent=0 // pred_check
    _
  $region19: #{decoder_layer_forward.5} parent=0 // pred_check_branch
    %21 = sbr.rel (0) target = $region21
  $region20: #{decoder_layer_forward.5} parent=0 // pred_region
    _
  $region21: #{decoder_layer_forward.5} parent=0 // pred_fallthru
    _
  // Predicated region
  $region22: #{decoder_layer_forward.5} parent=0 // pred_check
    _
  $region23: #{decoder_layer_forward.5} parent=0 // pred_check_branch
    %23 = sbr.rel (0) target = $region25
  $region24: #{decoder_layer_forward.5} parent=0 // pred_region
    _
  $region25: #{decoder_layer_forward.5} parent=0 // pred_fallthru
    _
  // Predicated region
  $region26: #{decoder_layer_forward.5} parent=0 // pred_check
    _
  $region27: #{decoder_layer_forward.5} parent=0 // pred_check_branch
    %25 = sbr.rel (0) target = $region29
  $region28: #{decoder_layer_forward.5} parent=0 // pred_region
    _
  $region29: #{decoder_layer_forward.5} parent=0 // pred_fallthru
    _
  %v26 = vld [vmem:[%s0] sm:$0xff]
  %v27 = vld [vmem:[%s0 + $0x8] sm:$0xff]
  %v28 = vld [vmem:[%s1] sm:$0xff]
  %v29 = vld [vmem:[%s1 + $0x8] sm:$0xff]
  %v30 = vld [vmem:[%s1 + $0x10] sm:$0xff]
  %v31 = vld [vmem:[%s1 + $0x18] sm:$0xff]
  %v32 = vld [vmem:[%s2] sm:$0x1]
  %v34 = vlaneseq
  %v35 = vshrl.u32 %v34, 7
  %v36 = vsub.s32 0, %v35
  %v37 = vrot.slane %v32, %v36
  %vm39 = vcmask 261120
  %v41 = vsel %vm39, %v26, 0
  %v44 = vsel %vm39, %v27, 0
  %46 = vmatprep.subr.mxu0 0.0
  %47 = vmatpush1.msra.mxu0 %v28
  %48 = vmatprep.subr.mxu0 0.0
  %49 = vmatpush1.msra.mxu0 %v29
  %50 = vmatprep.subr.mxu0 0.0
  %51 = vmatpush1.msra.mxu0 %v30
  %52 = vmatprep.subr.mxu0 0.0
  %53 = vmatpush1.msra.mxu0 %v31
  %54 = vmatprep.subr.mxu0 0.0
  %55 = vmatpush1.msra.mxu0 0.0
  %56 = vmatprep.subr.mxu0 0.0
  %57 = vmatpush1.msra.mxu0 0.0
  %58 = vmatprep.subr.mxu0 0.0
  %59 = vmatpush1.msra.mxu0 0.0
  %60 = vmatprep.subr.mxu0 0.0
  %61 = vmatpush1.msra.mxu0 0.0
  %62 = vmatprep.subr.mxu0 0.0
  %63 = vmatpush1.msra.mxu0 0.0
  %64 = vmatprep.subr.mxu0 0.0
  %65 = vmatpush1.msra.mxu0 0.0
  %66 = vmatprep.subr.mxu0 0.0
  %67 = vmatpush1.msra.mxu0 0.0
  %68 = vmatprep.subr.mxu0 0.0
  %69 = vmatpush1.msra.mxu0 0.0
  %70 = vmatprep.subr.mxu0 0.0
  %71 = vmatpush1.msra.mxu0 0.0
  %72 = vmatprep.subr.mxu0 0.0
  %73 = vmatpush1.msra.mxu0 0.0
  %74 = vmatprep.subr.mxu0 0.0
  %75 = vmatpush1.msra.mxu0 0.0
  %76 = vmatprep.subr.mxu0 0.0
  %77 = vmatpush1.msra.mxu0 0.0
  %78 = vmatprep.subr.mxu0 0.0
  %79 = vmatpush1.msra.mxu0 0.0
  %80 = vmatprep.subr.mxu0 0.0
  %81 = vmatpush1.msra.mxu0 0.0
  %82 = vmatprep.subr.mxu0 0.0
  %83 = vmatpush1.msra.mxu0 0.0
  %84 = vmatprep.subr.mxu0 0.0
  %85 = vmatpush1.msra.mxu0 0.0
  %86 = vmatprep.subr.mxu0 0.0
  %87 = vmatpush1.msra.mxu0 0.0
  %88 = vmatprep.subr.mxu0 0.0
  %89 = vmatpush1.msra.mxu0 0.0
  %90 = vmatprep.subr.mxu0 0.0
  %91 = vmatpush1.msra.mxu0 0.0
  %92 = vmatprep.subr.mxu0 0.0
  %93 = vmatpush1.msra.mxu0 0.0
  %94 = vmatprep.subr.mxu0 0.0
  %95 = vmatpush1.msra.mxu0 0.0
  %96 = vmatprep.subr.mxu0 0.0
  %97 = vmatpush1.msra.mxu0 0.0
  %98 = vmatprep.subr.mxu0 0.0
  %99 = vmatpush1.msra.mxu0 0.0
  %100 = vmatprep.subr.mxu0 0.0
  %101 = vmatpush1.msra.mxu0 0.0
  %102 = vmatprep.subr.mxu0 0.0
  %103 = vmatpush1.msra.mxu0 0.0
  %104 = vmatprep.subr.mxu0 0.0
  %105 = vmatpush1.msra.mxu0 0.0
  %106 = vmatprep.subr.mxu0 0.0
  %107 = vmatpush1.msra.mxu0 0.0
  %108 = vmatprep.subr.mxu0 0.0
  %109 = vmatpush1.msra.mxu0 0.0
  %110 = vmatprep.mubr.f32.mxu0 0.0
  %111 = vmatmul.mubr.f32.gmra.mrb[0].mxu0 %v41
  %v112 = vpop.f32.mrb[0].mxu0
  %v113 = vadd.f32 %v37, %v112
  %v114 = vpop.f32.mrb[0].mxu0
  %115 = vmatprep.mubr.f32.mxu0 0.0
  %116 = vmatmul.mubr.f32.gmra.mrb[0].mxu0 %v44
  %v117 = vpop.f32.mrb[0].mxu0
  %v118 = vadd.f32 %v37, %v117
  %v119 = vpop.f32.mrb[0].mxu0
  %120 = vdwg.mxu0
  %v121 = vmax.f32 %v113, 0.0
  %v122 = vmax.f32 %v118, 0.0
  %v123 = vld [vmem:[%s3] sm:$0xff]
  %v124 = vld [vmem:[%s3 + $0x8] sm:$0xff]
  %v125 = vld [vmem:[%s3 + $0x10] sm:$0xff]
  %v126 = vld [vmem:[%s3 + $0x18] sm:$0xff]
  %v127 = vld [vmem:[%s3 + $0x20] sm:$0xff]
  %v128 = vld [vmem:[%s3 + $0x28] sm:$0xff]
  %v129 = vld [vmem:[%s3 + $0x30] sm:$0xff]
  %v130 = vld [vmem:[%s3 + $0x38] sm:$0xff]
  %v131 = vld [vmem:[%s4] sm:$0x1]
  %v133 = vlaneseq
  %v134 = vshrl.u32 %v133, 7
  %v135 = vsub.s32 0, %v134
  %v136 = vrot.slane %v131, %v135
  %vm138 = vcmask 523264
  %v140 = vsel %vm138, %v121, 0
  %v143 = vsel %vm138, %v122, 0
  %145 = vmatprep.subr.mxu0 0.0
  %146 = vmatpush1.msra.mxu0 %v123
  %147 = vmatprep.subr.mxu0 0.0
  %148 = vmatpush1.msra.mxu0 %v124
  %149 = vmatprep.subr.mxu0 0.0
  %150 = vmatpush1.msra.mxu0 %v125
  %151 = vmatprep.subr.mxu0 0.0
  %152 = vmatpush1.msra.mxu0 %v126
  %153 = vmatprep.subr.mxu0 0.0
  %154 = vmatpush1.msra.mxu0 %v127
  %155 = vmatprep.subr.mxu0 0.0
  %156 = vmatpush1.msra.mxu0 %v128
  %157 = vmatprep.subr.mxu0 0.0
  %158 = vmatpush1.msra.mxu0 %v129
  %159 = vmatprep.subr.mxu0 0.0
  %160 = vmatpush1.msra.mxu0 %v130
  %161 = vmatprep.subr.mxu0 0.0
  %162 = vmatpush1.msra.mxu0 0.0
  %163 = vmatprep.subr.mxu0 0.0
  %164 = vmatpush1.msra.mxu0 0.0
  %165 = vmatprep.subr.mxu0 0.0
  %166 = vmatpush1.msra.mxu0 0.0
  %167 = vmatprep.subr.mxu0 0.0
  %168 = vmatpush1.msra.mxu0 0.0
  %169 = vmatprep.subr.mxu0 0.0
  %170 = vmatpush1.msra.mxu0 0.0
  %171 = vmatprep.subr.mxu0 0.0
  %172 = vmatpush1.msra.mxu0 0.0
  %173 = vmatprep.subr.mxu0 0.0
  %174 = vmatpush1.msra.mxu0 0.0
  %175 = vmatprep.subr.mxu0 0.0
  %176 = vmatpush1.msra.mxu0 0.0
  %177 = vmatprep.subr.mxu0 0.0
  %178 = vmatpush1.msra.mxu0 0.0
  %179 = vmatprep.subr.mxu0 0.0
  %180 = vmatpush1.msra.mxu0 0.0
  %181 = vmatprep.subr.mxu0 0.0
  %182 = vmatpush1.msra.mxu0 0.0
  %183 = vmatprep.subr.mxu0 0.0
  %184 = vmatpush1.msra.mxu0 0.0
  %185 = vmatprep.subr.mxu0 0.0
  %186 = vmatpush1.msra.mxu0 0.0
  %187 = vmatprep.subr.mxu0 0.0
  %188 = vmatpush1.msra.mxu0 0.0
  %189 = vmatprep.subr.mxu0 0.0
  %190 = vmatpush1.msra.mxu0 0.0
  %191 = vmatprep.subr.mxu0 0.0
  %192 = vmatpush1.msra.mxu0 0.0
  %193 = vmatprep.subr.mxu0 0.0
  %194 = vmatpush1.msra.mxu0 0.0
  %195 = vmatprep.subr.mxu0 0.0
  %196 = vmatpush1.msra.mxu0 0.0
  %197 = vmatprep.subr.mxu0 0.0
  %198 = vmatpush1.msra.mxu0 0.0
  %199 = vmatprep.subr.mxu0 0.0
  %200 = vmatpush1.msra.mxu0 0.0
  %201 = vmatprep.subr.mxu0 0.0
  %202 = vmatpush1.msra.mxu0 0.0
  %203 = vmatprep.subr.mxu0 0.0
  %204 = vmatpush1.msra.mxu0 0.0
  %205 = vmatprep.subr.mxu0 0.0
  %206 = vmatpush1.msra.mxu0 0.0
  %207 = vmatprep.subr.mxu0 0.0
  %208 = vmatpush1.msra.mxu0 0.0
  %209 = vmatprep.mubr.f32.mxu0 0.0
  %210 = vmatmul.mubr.f32.gmra.mrb[0].mxu0 %v140
  %v211 = vpop.f32.mrb[0].mxu0
  %v212 = vadd.f32 %v136, %v211
  %v213 = vpop.f32.mrb[0].mxu0
  %214 = vmatprep.mubr.f32.mxu0 0.0
  %215 = vmatmul.mubr.f32.gmra.mrb[0].mxu0 %v143
  %v216 = vpop.f32.mrb[0].mxu0
  %v217 = vadd.f32 %v136, %v216
  %v218 = vpop.f32.mrb[0].mxu0
  %219 = vdwg.mxu0
  %v220 = vadd.f32 %v26, %v212
  %v221 = vadd.f32 %v27, %v217
  %v222 = vsel %vm39, %v220, 0.0
  %223 = vadd.xlane.f32.xlu0 %v222
  %v224 = vpop.xlane.xlu0 %223
  %v225 = vsel %vm39, %v221, 0.0
  %226 = vadd.xlane.f32.xlu0 %v225
  %v227 = vpop.xlane.xlu0 %226
  %v228 = vrcp.pop 32.0
  %v229 = vmul.f32 %v224, %v228
  %v230 = vmul.f32 %v227, %v228
  %v231 = vsub.f32 %v220, %v229
  %v232 = vsub.f32 %v221, %v230
  %v233 = vmul.f32 %v231, %v231
  %v234 = vmul.f32 %v232, %v232
  %v235 = vsel %vm39, %v233, 0.0
  %236 = vadd.xlane.f32.xlu0 %v235
  %v237 = vpop.xlane.xlu0 %236
  %v238 = vsel %vm39, %v234, 0.0
  %239 = vadd.xlane.f32.xlu0 %v238
  %v240 = vpop.xlane.xlu0 %239
  %v241 = vmul.f32 %v237, %v228
  %v242 = vmul.f32 %v240, %v228
  %v243 = vadd.f32 %v241, 1e-05
  %v244 = vadd.f32 %v242, 1e-05
  %v245 = vrsqrt.pop %v243
  %v246 = vrsqrt.pop %v244
  %v247 = vmul.f32 %v231, %v245
  %v248 = vmul.f32 %v232, %v246
  %v249 = vld [vmem:[%s5] sm:$0x1]
  %v251 = vlaneseq
  %v252 = vshrl.u32 %v251, 7
  %v253 = vsub.s32 0, %v252
  %v254 = vrot.slane %v249, %v253
  %v256 = vmul.f32 %v247, %v254
  %v257 = vmul.f32 %v248, %v254
  %v258 = vld [vmem:[%s6] sm:$0x1]
  %v260 = vlaneseq
  %v261 = vshrl.u32 %v260, 7
  %v262 = vsub.s32 0, %v261
  %v263 = vrot.slane %v258, %v262
  %v265 = vadd.f32 %v256, %v263
  %v266 = vadd.f32 %v257, %v263
  %267 = vst.msk [vmem:[%s7] sm:$0xff] %vm39, %v265
  %268 = vst.msk [vmem:[%s7 + $0x8] sm:$0xff] %vm39, %v266
  // Predicated region
  $region30: #{decoder_layer_forward.5} parent=0 // pred_check
    _
  $region31: #{decoder_layer_forward.5} parent=0 // pred_check_branch
    %270 = sbr.rel (0) target = $region33
  $region32: #{decoder_layer_forward.5} parent=0 // pred_region
    _
  $region33: #{decoder_layer_forward.5} parent=0 // pred_fallthru
    _
  // Predicated region
  $region34: #{decoder_layer_forward.5} parent=0 // pred_check
    _
  $region35: #{decoder_layer_forward.5} parent=0 // pred_check_branch
    %272 = sbr.rel (0) target = $region37
  $region36: #{decoder_layer_forward.5} parent=0 // pred_region
    _
  $region37: #{decoder_layer_forward.5} parent=0 // pred_fallthru
    _

// kernel: decoder_layer_forward.3
$region0: #{decoder_layer_forward.3}
  #allocation0 [shape = 'u32[]', space=smem, size = 0x4, offset = 0x4, fixed_abs, tag = 'smem constant byte address 0x4 - core index']
  #allocation1 [shape = 'u32[144,128]{1,0:T(1,128)}', space=vmem, size = 0x12000, scoped, tag = 'internal scratch']
  #allocation2 [shape = 'f32[8,32]{1,0:T(8,128)}', space=vmem, size = 0x1000, scoped, tag = 'scratch operand']
  %s0 = inlined_call_operand.vmem [shape: f32[16,32], index: 0, kind: input, shape index: {}]
  %s1 = inlined_call_operand.vmem [shape: f32[16,32], index: 1, kind: input, shape index: {}]
  %s2 = inlined_call_operand.vmem [shape: f32[32,32], index: 2, kind: input, shape index: {}]
  %s3 = inlined_call_operand.vmem [shape: f32[32,32], index: 3, kind: input, shape index: {}]
  %s4 = inlined_call_operand.vmem [shape: f32[32,32], index: 4, kind: input, shape index: {}]
  %s5 = inlined_call_operand.vmem [shape: f32[1,32], index: 5, kind: input, shape index: {}]
  %s6 = inlined_call_operand.vmem [shape: f32[32,32], index: 6, kind: input, shape index: {}]
  %s7 = inlined_call_operand.vmem [shape: f32[1,32], index: 7, kind: input, shape index: {}]
  %s8 = inlined_call_operand.vmem [shape: f32[32,32], index: 8, kind: input, shape index: {}]
  %s9 = inlined_call_operand.vmem [shape: f32[1,32], index: 9, kind: input, shape index: {}]
  %s10 = inlined_call_operand.vmem [shape: f32[32,32], index: 10, kind: input, shape index: {}]
  %s11 = inlined_call_operand.vmem [shape: f32[1,32], index: 11, kind: input, shape index: {}]
  %s12 = inlined_call_operand.vmem [shape: f32[1,32], index: 12, kind: input, shape index: {}]
  %s13 = inlined_call_operand.vmem [shape: f32[1,32], index: 13, kind: input, shape index: {}]
  %s14 = inlined_call_operand.vmem [shape: f32[16,32], index: 14, kind: output, shape index: {}]
  %s15 = sld [smem:[#allocation0]]
  $region89: #{decoder_layer_forward.3} parent=0
    _
  %s17 = ssub.s32 1, %s15
  %s18 = scalar_select 0, %s17, %s15
  loop: start=0, step=1, limit=4
  $region2: #{decoder_layer_forward.3} parent=0 // loop_pre_header
    _
  $region3: #{decoder_layer_forward.3} parent=0 // loop_header
    %s20 = sphi 0, %s24
    %p21 = scmp.ge.s32.totalorder %s20, 4
    %s30 = sphi 0, %s32
    %s33 = sphi 0, %s30
    %s34 = sphi 0, %s33
    %s50 = sphi 0, %s34
    %s56 = sphi 0, %s58
    %s59 = sphi 0, %s56
    %s60 = sphi 0, %s59
    %s76 = sphi 0, %s60
    %s82 = sphi 0, %s84
    %s85 = sphi 0, %s82
    %s86 = sphi 0, %s85
    %s102 = sphi 0, %s86
    %s108 = sphi 0, %s110
    %s111 = sphi 0, %s108
    %s112 = sphi 0, %s111
    %s128 = sphi 0, %s112
    %s132 = sphi 0, %s132
    %s134 = sphi 0, %s132
    %s135 = sphi 0, %s134
    %s149 = sphi 0, %s135
    %s153 = sphi 0, %s153
    %s155 = sphi 0, %s153
    %s156 = sphi 0, %s155
    %s170 = sphi 0, %s156
    %s174 = sphi 0, %s174
    %s176 = sphi 0, %s174
    %s177 = sphi 0, %s176
    %s191 = sphi 0, %s177
    %s195 = sphi 0, %s195
    %s197 = sphi 0, %s195
    %s198 = sphi 0, %s197
    %s212 = sphi 0, %s198
    %s216 = sphi 0, %s216
    %s218 = sphi 0, %s216
    %s219 = sphi 0, %s218
    %s233 = sphi 0, %s219
    %s237 = sphi 0, %s237
    %s239 = sphi 0, %s237
    %s240 = sphi 0, %s239
    %s254 = sphi 0, %s240
    %s258 = sphi 0, %s258
    %s260 = sphi 0, %s258
    %s261 = sphi 0, %s260
    %s275 = sphi 0, %s261
    %s279 = sphi 0, %s279
    %s281 = sphi 0, %s279
    %s282 = sphi 0, %s281
    %s296 = sphi 0, %s282
    %s300 = sphi 0, %s300
    %s302 = sphi 0, %s300
    %s303 = sphi 0, %s302
    %s317 = sphi 0, %s303
    %s321 = sphi 0, %s321
    %s323 = sphi 0, %s321
    %s324 = sphi 0, %s323
    %s338 = sphi 0, %s324
    %s344 = sphi 0, %s346
    %s347 = sphi 0, %s344
    %s348 = sphi 0, %s347
    %s364 = sphi 0, %s348
  $region4: #{decoder_layer_forward.3} parent=0 // loop_header_branch
    %23 = sbr.rel (%p21) target = $region8
  $region5: #{decoder_layer_forward.3} parent=0 // loop_body
    %s25 = ssub.s32 %s20, 1
    %s26 = ssub.s32 %s20, 2
    %s27 = sadd.s32 %s20, 1
    %s28 = ssub.s32 %s20, %s27
    %p29 = scmp.eq.s32.totalorder %s28, 0
    %s31 = sadd.s32 %s30, 1
    %s32 = scalar_select %p29, %s30, %s31
    %p35 = pneg %p29
    %p36 = scmp.eq.s32.totalorder %s20, 1
    %p37 = por %p35, %p36
    %p38 = scmp.ne.s32.totalorder %s30, %s33
    %p39 = scmp.eq.s32.totalorder %s20, 0
    %p40 = por %p38, %p39
    %p41 = scmp.ne.s32.totalorder %s30, %s33
    %p42 = scmp.eq.s32.totalorder %s25, 1
    %p43 = por %p41, %p42
    %p44 = scmp.ne.s32.totalorder %s33, %s34
    %p45 = scmp.eq.s32.totalorder %s25, 0
    %p46 = por %p44, %p45
    %p47 = scmp.ne.s32.totalorder %s33, %s34
    %p48 = scmp.eq.s32.totalorder %s26, 1
    %p49 = por %p47, %p48
    %p51 = scmp.ne.s32.totalorder %s34, %s50
    %p52 = scmp.eq.s32.totalorder %s26, 0
    %p53 = por %p51, %p52
    %s54 = ssub.s32 %s20, %s27
    %p55 = scmp.eq.s32.totalorder %s54, 0
    %s57 = sadd.s32 %s56, 1
    %s58 = scalar_select %p55, %s56, %s57
    %p61 = pneg %p55
    %p62 = scmp.eq.s32.totalorder %s20, 1
    %p63 = por %p61, %p62
    %p64 = scmp.ne.s32.totalorder %s56, %s59
    %p65 = scmp.eq.s32.totalorder %s20, 0
    %p66 = por %p64, %p65
    %p67 = scmp.ne.s32.totalorder %s56, %s59
    %p68 = scmp.eq.s32.totalorder %s25, 1
    %p69 = por %p67, %p68
    %p70 = scmp.ne.s32.totalorder %s59, %s60
    %p71 = scmp.eq.s32.totalorder %s25, 0
    %p72 = por %p70, %p71
    %p73 = scmp.ne.s32.totalorder %s59, %s60
    %p74 = scmp.eq.s32.totalorder %s26, 1
    %p75 = por %p73, %p74
    %p77 = scmp.ne.s32.totalorder %s60, %s76
    %p78 = scmp.eq.s32.totalorder %s26, 0
    %p79 = por %p77, %p78
    %s80 = ssub.s32 %s20, %s27
    %p81 = scmp.eq.s32.totalorder %s80, 0
    %s83 = sadd.s32 %s82, 1
    %s84 = scalar_select %p81, %s82, %s83
    %p87 = pneg %p81
    %p88 = scmp.eq.s32.totalorder %s20, 1
    %p89 = por %p87, %p88
    %p90 = scmp.ne.s32.totalorder %s82, %s85
    %p91 = scmp.eq.s32.totalorder %s20, 0
    %p92 = por %p90, %p91
    %p93 = scmp.ne.s32.totalorder %s82, %s85
    %p94 = scmp.eq.s32.totalorder %s25, 1
    %p95 = por %p93, %p94
    %p96 = scmp.ne.s32.totalorder %s85, %s86
    %p97 = scmp.eq.s32.totalorder %s25, 0
    %p98 = por %p96, %p97
    %p99 = scmp.ne.s32.totalorder %s85, %s86
    %p100 = scmp.eq.s32.totalorder %s26, 1
    %p101 = por %p99, %p100
    %p103 = scmp.ne.s32.totalorder %s86, %s102
    %p104 = scmp.eq.s32.totalorder %s26, 0
    %p105 = por %p103, %p104
    %s106 = ssub.s32 %s20, %s27
    %p107 = scmp.eq.s32.totalorder %s106, 0
    %s109 = sadd.s32 %s108, 1
    %s110 = scalar_select %p107, %s108, %s109
    %p113 = pneg %p107
    %p114 = scmp.eq.s32.totalorder %s20, 1
    %p115 = por %p113, %p114
    %p116 = scmp.ne.s32.totalorder %s108, %s111
    %p117 = scmp.eq.s32.totalorder %s20, 0
    %p118 = por %p116, %p117
    %p119 = scmp.ne.s32.totalorder %s108, %s111
    %p120 = scmp.eq.s32.totalorder %s25, 1
    %p121 = por %p119, %p120
    %p122 = scmp.ne.s32.totalorder %s111, %s112
    %p123 = scmp.eq.s32.totalorder %s25, 0
    %p124 = por %p122, %p123
    %p125 = scmp.ne.s32.totalorder %s111, %s112
    %p126 = scmp.eq.s32.totalorder %s26, 1
    %p127 = por %p125, %p126
    %p129 = scmp.ne.s32.totalorder %s112, %s128
    %p130 = scmp.eq.s32.totalorder %s26, 0
    %p131 = por %p129, %p130
    %s133 = sadd.s32 %s132, 1
    %p136 = scmp.eq.s32.totalorder %s20, 1
    %p137 = scmp.ne.s32.totalorder %s132, %s134
    %p138 = scmp.eq.s32.totalorder %s20, 0
    %p139 = por %p137, %p138
    %p140 = scmp.ne.s32.totalorder %s132, %s134
    %p141 = scmp.eq.s32.totalorder %s25, 1
    %p142 = por %p140, %p141
    %p143 = scmp.ne.s32.totalorder %s134, %s135
    %p144 = scmp.eq.s32.totalorder %s25, 0
    %p145 = por %p143, %p144
    %p146 = scmp.ne.s32.totalorder %s134, %s135
    %p147 = scmp.eq.s32.totalorder %s26, 1
    %p148 = por %p146, %p147
    %p150 = scmp.ne.s32.totalorder %s135, %s149
    %p151 = scmp.eq.s32.totalorder %s26, 0
    %p152 = por %p150, %p151
    %s154 = sadd.s32 %s153, 1
    %p157 = scmp.eq.s32.totalorder %s20, 1
    %p158 = scmp.ne.s32.totalorder %s153, %s155
    %p159 = scmp.eq.s32.totalorder %s20, 0
    %p160 = por %p158, %p159
    %p161 = scmp.ne.s32.totalorder %s153, %s155
    %p162 = scmp.eq.s32.totalorder %s25, 1
    %p163 = por %p161, %p162
    %p164 = scmp.ne.s32.totalorder %s155, %s156
    %p165 = scmp.eq.s32.totalorder %s25, 0
    %p166 = por %p164, %p165
    %p167 = scmp.ne.s32.totalorder %s155, %s156
    %p168 = scmp.eq.s32.totalorder %s26, 1
    %p169 = por %p167, %p168
    %p171 = scmp.ne.s32.totalorder %s156, %s170
    %p172 = scmp.eq.s32.totalorder %s26, 0
    %p173 = por %p171, %p172
    %s175 = sadd.s32 %s174, 1
    %p178 = scmp.eq.s32.totalorder %s20, 1
    %p179 = scmp.ne.s32.totalorder %s174, %s176
    %p180 = scmp.eq.s32.totalorder %s20, 0
    %p181 = por %p179, %p180
    %p182 = scmp.ne.s32.totalorder %s174, %s176
    %p183 = scmp.eq.s32.totalorder %s25, 1
    %p184 = por %p182, %p183
    %p185 = scmp.ne.s32.totalorder %s176, %s177
    %p186 = scmp.eq.s32.totalorder %s25, 0
    %p187 = por %p185, %p186
    %p188 = scmp.ne.s32.totalorder %s176, %s177
    %p189 = scmp.eq.s32.totalorder %s26, 1
    %p190 = por %p188, %p189
    %p192 = scmp.ne.s32.totalorder %s177, %s191
    %p193 = scmp.eq.s32.totalorder %s26, 0
    %p194 = por %p192, %p193
    %s196 = sadd.s32 %s195, 1
    %p199 = scmp.eq.s32.totalorder %s20, 1
    %p200 = scmp.ne.s32.totalorder %s195, %s197
    %p201 = scmp.eq.s32.totalorder %s20, 0
    %p202 = por %p200, %p201
    %p203 = scmp.ne.s32.totalorder %s195, %s197
    %p204 = scmp.eq.s32.totalorder %s25, 1
    %p205 = por %p203, %p204
    %p206 = scmp.ne.s32.totalorder %s197, %s198
    %p207 = scmp.eq.s32.totalorder %s25, 0
    %p208 = por %p206, %p207
    %p209 = scmp.ne.s32.totalorder %s197, %s198
    %p210 = scmp.eq.s32.totalorder %s26, 1
    %p211 = por %p209, %p210
    %p213 = scmp.ne.s32.totalorder %s198, %s212
    %p214 = scmp.eq.s32.totalorder %s26, 0
    %p215 = por %p213, %p214
    %s217 = sadd.s32 %s216, 1
    %p220 = scmp.eq.s32.totalorder %s20, 1
    %p221 = scmp.ne.s32.totalorder %s216, %s218
    %p222 = scmp.eq.s32.totalorder %s20, 0
    %p223 = por %p221, %p222
    %p224 = scmp.ne.s32.totalorder %s216, %s218
    %p225 = scmp.eq.s32.totalorder %s25, 1
    %p226 = por %p224, %p225
    %p227 = scmp.ne.s32.totalorder %s218, %s219
    %p228 = scmp.eq.s32.totalorder %s25, 0
    %p229 = por %p227, %p228
    %p230 = scmp.ne.s32.totalorder %s218, %s219
    %p231 = scmp.eq.s32.totalorder %s26, 1
    %p232 = por %p230, %p231
    %p234 = scmp.ne.s32.totalorder %s219, %s233
    %p235 = scmp.eq.s32.totalorder %s26, 0
    %p236 = por %p234, %p235
    %s238 = sadd.s32 %s237, 1
    %p241 = scmp.eq.s32.totalorder %s20, 1
    %p242 = scmp.ne.s32.totalorder %s237, %s239
    %p243 = scmp.eq.s32.totalorder %s20, 0
    %p244 = por %p242, %p243
    %p245 = scmp.ne.s32.totalorder %s237, %s239
    %p246 = scmp.eq.s32.totalorder %s25, 1
    %p247 = por %p245, %p246
    %p248 = scmp.ne.s32.totalorder %s239, %s240
    %p249 = scmp.eq.s32.totalorder %s25, 0
    %p250 = por %p248, %p249
    %p251 = scmp.ne.s32.totalorder %s239, %s240
    %p252 = scmp.eq.s32.totalorder %s26, 1
    %p253 = por %p251, %p252
    %p255 = scmp.ne.s32.totalorder %s240, %s254
    %p256 = scmp.eq.s32.totalorder %s26, 0
    %p257 = por %p255, %p256
    %s259 = sadd.s32 %s258, 1
    %p262 = scmp.eq.s32.totalorder %s20, 1
    %p263 = scmp.ne.s32.totalorder %s258, %s260
    %p264 = scmp.eq.s32.totalorder %s20, 0
    %p265 = por %p263, %p264
    %p266 = scmp.ne.s32.totalorder %s258, %s260
    %p267 = scmp.eq.s32.totalorder %s25, 1
    %p268 = por %p266, %p267
    %p269 = scmp.ne.s32.totalorder %s260, %s261
    %p270 = scmp.eq.s32.totalorder %s25, 0
    %p271 = por %p269, %p270
    %p272 = scmp.ne.s32.totalorder %s260, %s261
    %p273 = scmp.eq.s32.totalorder %s26, 1
    %p274 = por %p272, %p273
    %p276 = scmp.ne.s32.totalorder %s261, %s275
    %p277 = scmp.eq.s32.totalorder %s26, 0
    %p278 = por %p276, %p277
    %s280 = sadd.s32 %s279, 1
    %p283 = scmp.eq.s32.totalorder %s20, 1
    %p284 = scmp.ne.s32.totalorder %s279, %s281
    %p285 = scmp.eq.s32.totalorder %s20, 0
    %p286 = por %p284, %p285
    %p287 = scmp.ne.s32.totalorder %s279, %s281
    %p288 = scmp.eq.s32.totalorder %s25, 1
    %p289 = por %p287, %p288
    %p290 = scmp.ne.s32.totalorder %s281, %s282
    %p291 = scmp.eq.s32.totalorder %s25, 0
    %p292 = por %p290, %p291
    %p293 = scmp.ne.s32.totalorder %s281, %s282
    %p294 = scmp.eq.s32.totalorder %s26, 1
    %p295 = por %p293, %p294
    %p297 = scmp.ne.s32.totalorder %s282, %s296
    %p298 = scmp.eq.s32.totalorder %s26, 0
    %p299 = por %p297, %p298
    %s301 = sadd.s32 %s300, 1
    %p304 = scmp.eq.s32.totalorder %s20, 1
    %p305 = scmp.ne.s32.totalorder %s300, %s302
    %p306 = scmp.eq.s32.totalorder %s20, 0
    %p307 = por %p305, %p306
    %p308 = scmp.ne.s32.totalorder %s300, %s302
    %p309 = scmp.eq.s32.totalorder %s25, 1
    %p310 = por %p308, %p309
    %p311 = scmp.ne.s32.totalorder %s302, %s303
    %p312 = scmp.eq.s32.totalorder %s25, 0
    %p313 = por %p311, %p312
    %p314 = scmp.ne.s32.totalorder %s302, %s303
    %p315 = scmp.eq.s32.totalorder %s26, 1
    %p316 = por %p314, %p315
    %p318 = scmp.ne.s32.totalorder %s303, %s317
    %p319 = scmp.eq.s32.totalorder %s26, 0
    %p320 = por %p318, %p319
    %s322 = sadd.s32 %s321, 1
    %p325 = scmp.eq.s32.totalorder %s20, 1
    %p326 = scmp.ne.s32.totalorder %s321, %s323
    %p327 = scmp.eq.s32.totalorder %s20, 0
    %p328 = por %p326, %p327
    %p329 = scmp.ne.s32.totalorder %s321, %s323
    %p330 = scmp.eq.s32.totalorder %s25, 1
    %p331 = por %p329, %p330
    %p332 = scmp.ne.s32.totalorder %s323, %s324
    %p333 = scmp.eq.s32.totalorder %s25, 0
    %p334 = por %p332, %p333
    %p335 = scmp.ne.s32.totalorder %s323, %s324
    %p336 = scmp.eq.s32.totalorder %s26, 1
    %p337 = por %p335, %p336
    %p339 = scmp.ne.s32.totalorder %s324, %s338
    %p340 = scmp.eq.s32.totalorder %s26, 0
    %p341 = por %p339, %p340
    %s342 = ssub.s32 %s20, %s27
    %p343 = scmp.eq.s32.totalorder %s342, 0
    %s345 = sadd.s32 %s344, 1
    %s346 = scalar_select %p343, %s344, %s345
    %p349 = pneg %p343
    %p350 = scmp.eq.s32.totalorder %s20, 1
    %p351 = por %p349, %p350
    %p352 = scmp.ne.s32.totalorder %s344, %s347
    %p353 = scmp.eq.s32.totalorder %s20, 0
    %p354 = por %p352, %p353
    %p355 = scmp.ne.s32.totalorder %s344, %s347
    %p356 = scmp.eq.s32.totalorder %s25, 1
    %p357 = por %p355, %p356
    %p358 = scmp.ne.s32.totalorder %s347, %s348
    %p359 = scmp.eq.s32.totalorder %s25, 0
    %p360 = por %p358, %p359
    %p361 = scmp.ne.s32.totalorder %s347, %s348
    %p362 = scmp.eq.s32.totalorder %s26, 1
    %p363 = por %p361, %p362
    %p365 = scmp.ne.s32.totalorder %s348, %s364
    %p366 = scmp.eq.s32.totalorder %s26, 0
    %p367 = por %p365, %p366
    %p368 = scmp.le.s32.totalorder 1, %s20
    %p369 = scmp.lt.s32.totalorder %s20, 3
    %p370 = pnand %p368, %p369
    %p371 = pneg %p370
    // Predicated region
    $region9: #{decoder_layer_forward.3} parent=5 // pred_check
      _
    $region10: #{decoder_layer_forward.3} parent=5 // pred_check_branch
      %373 = sbr.rel (%p370) target = $region12
    $region11: #{decoder_layer_forward.3} parent=5 // pred_region
      %s374 = ssub.s32 %s20, 1
      // Predicated region
      $region13: #{decoder_layer_forward.3} parent=11 // pred_check
        %p375 = pneg %p145
      $region14: #{decoder_layer_forward.3} parent=11 // pred_check_branch
        %377 = sbr.rel (%p375) target = $region16
      $region15: #{decoder_layer_forward.3} parent=11 // pred_region
        _
      $region16: #{decoder_layer_forward.3} parent=11 // pred_fallthru
        _
      // Predicated region
      $region17: #{decoder_layer_forward.3} parent=11 // pred_check
        %p378 = pneg %p166
      $region18: #{decoder_layer_forward.3} parent=11 // pred_check_branch
        %380 = sbr.rel (%p378) target = $region20
      $region19: #{decoder_layer_forward.3} parent=11 // pred_region
        _
      $region20: #{decoder_layer_forward.3} parent=11 // pred_fallthru
        _
      // Predicated region
      $region21: #{decoder_layer_forward.3} parent=11 // pred_check
        %p381 = pneg %p187
      $region22: #{decoder_layer_forward.3} parent=11 // pred_check_branch
        %383 = sbr.rel (%p381) target = $region24
      $region23: #{decoder_layer_forward.3} parent=11 // pred_region
        _
      $region24: #{decoder_layer_forward.3} parent=11 // pred_fallthru
        _
      // Predicated region
      $region25: #{decoder_layer_forward.3} parent=11 // pred_check
        %p384 = pneg %p208
      $region26: #{decoder_layer_forward.3} parent=11 // pred_check_branch
        %386 = sbr.rel (%p384) target = $region28
      $region27: #{decoder_layer_forward.3} parent=11 // pred_region
        _
      $region28: #{decoder_layer_forward.3} parent=11 // pred_fallthru
        _
      // Predicated region
      $region29: #{decoder_layer_forward.3} parent=11 // pred_check
        %p387 = pneg %p229
      $region30: #{decoder_layer_forward.3} parent=11 // pred_check_branch
        %389 = sbr.rel (%p387) target = $region32
      $region31: #{decoder_layer_forward.3} parent=11 // pred_region
        _
      $region32: #{decoder_layer_forward.3} parent=11 // pred_fallthru
        _
      // Predicated region
      $region33: #{decoder_layer_forward.3} parent=11 // pred_check
        %p390 = pneg %p250
      $region34: #{decoder_layer_forward.3} parent=11 // pred_check_branch
        %392 = sbr.rel (%p390) target = $region36
      $region35: #{decoder_layer_forward.3} parent=11 // pred_region
        _
      $region36: #{decoder_layer_forward.3} parent=11 // pred_fallthru
        _
      // Predicated region
      $region37: #{decoder_layer_forward.3} parent=11 // pred_check
        %p393 = pneg %p271
      $region38: #{decoder_layer_forward.3} parent=11 // pred_check_branch
        %395 = sbr.rel (%p393) target = $region40
      $region39: #{decoder_layer_forward.3} parent=11 // pred_region
        _
      $region40: #{decoder_layer_forward.3} parent=11 // pred_fallthru
        _
      // Predicated region
      $region41: #{decoder_layer_forward.3} parent=11 // pred_check
        %p396 = pneg %p292
      $region42: #{decoder_layer_forward.3} parent=11 // pred_check_branch
        %398 = sbr.rel (%p396) target = $region44
      $region43: #{decoder_layer_forward.3} parent=11 // pred_region
        _
      $region44: #{decoder_layer_forward.3} parent=11 // pred_fallthru
        _
      // Predicated region
      $region45: #{decoder_layer_forward.3} parent=11 // pred_check
        %p399 = pneg %p313
      $region46: #{decoder_layer_forward.3} parent=11 // pred_check_branch
        %401 = sbr.rel (%p399) target = $region48
      $region47: #{decoder_layer_forward.3} parent=11 // pred_region
        _
      $region48: #{decoder_layer_forward.3} parent=11 // pred_fallthru
        _
      // Predicated region
      $region49: #{decoder_layer_forward.3} parent=11 // pred_check
        %p402 = pneg %p334
      $region50: #{decoder_layer_forward.3} parent=11 // pred_check_branch
        %404 = sbr.rel (%p402) target = $region52
      $region51: #{decoder_layer_forward.3} parent=11 // pred_region
        _
      $region52: #{decoder_layer_forward.3} parent=11 // pred_fallthru
        _
    $region12: #{decoder_layer_forward.3} parent=5 // pred_fallthru
      _
    %p405 = scmp.lt.s32.totalorder %s20, 2
    // Predicated region
    $region53: #{decoder_layer_forward.3} parent=5 // pred_check
      %p406 = pneg %p405
    $region54: #{decoder_layer_forward.3} parent=5 // pred_check_branch
      %408 = sbr.rel (%p406) target = $region56
    $region55: #{decoder_layer_forward.3} parent=5 // pred_region
      // Predicated region
      $region57: #{decoder_layer_forward.3} parent=55 // pred_check
        %p409 = pneg %p40
      $region58: #{decoder_layer_forward.3} parent=55 // pred_check_branch
        %411 = sbr.rel (%p409) target = $region60
      $region59: #{decoder_layer_forward.3} parent=55 // pred_region
        %p412 = scmp.lt.s32.totalorder %s20, 1
        %s413 = scalar_select %p412, %s20, 1
        %s414 = smul.addr %s413, 8
        %s415 = scalar_lea.vmem %s0, %s414
      $region60: #{decoder_layer_forward.3} parent=55 // pred_fallthru
        _
      // Predicated region
      $region61: #{decoder_layer_forward.3} parent=55 // pred_check
        %p416 = pneg %p66
      $region62: #{decoder_layer_forward.3} parent=55 // pred_check_branch
        %418 = sbr.rel (%p416) target = $region64
      $region63: #{decoder_layer_forward.3} parent=55 // pred_region
        %p419 = scmp.lt.s32.totalorder %s20, 1
        %s420 = scalar_select %p419, %s20, 1
        %s421 = smul.addr %s420, 8
        %s422 = scalar_lea.vmem %s1, %s421
      $region64: #{decoder_layer_forward.3} parent=55 // pred_fallthru
        _
      // Predicated region
      $region65: #{decoder_layer_forward.3} parent=55 // pred_check
        %p423 = pneg %p92
      $region66: #{decoder_layer_forward.3} parent=55 // pred_check_branch
        %425 = sbr.rel (%p423) target = $region68
      $region67: #{decoder_layer_forward.3} parent=55 // pred_region
        %s426 = smul.u32 2, %s20
        %p427 = scmp.lt.s32.totalorder %s426, 3
        %s428 = scalar_select %p427, %s426, 3
        %s429 = smul.addr %s428, 8
        %s430 = scalar_lea.vmem %s2, %s429
        %s431 = smul.u32 2, %s20
      $region68: #{decoder_layer_forward.3} parent=55 // pred_fallthru
        _
      // Predicated region
      $region69: #{decoder_layer_forward.3} parent=55 // pred_check
        %p432 = pneg %p118
      $region70: #{decoder_layer_forward.3} parent=55 // pred_check_branch
        %434 = sbr.rel (%p432) target = $region72
      $region71: #{decoder_layer_forward.3} parent=55 // pred_region
        %s435 = smul.u32 2, %s20
        %p436 = scmp.lt.s32.totalorder %s435, 3
        %s437 = scalar_select %p436, %s435, 3
        %s438 = smul.addr %s437, 8
        %s439 = scalar_lea.vmem %s3, %s438
        %s440 = smul.u32 2, %s20
      $region72: #{decoder_layer_forward.3} parent=55 // pred_fallthru
        _
    $region56: #{decoder_layer_forward.3} parent=5 // pred_fallthru
      _
    %p441 = scmp.le.s32.totalorder 1, %s20
    %p442 = scmp.lt.s32.totalorder %s20, 3
    %p443 = pnand %p441, %p442
    %p444 = pneg %p443
    // Predicated region
    $region73: #{decoder_layer_forward.3} parent=5 // pred_check
      _
    $region74: #{decoder_layer_forward.3} parent=5 // pred_check_branch
      %446 = sbr.rel (%p443) target = $region76
    $region75: #{decoder_layer_forward.3} parent=5 // pred_region
      %s447 = ssub.s32 %s20, 1
      %p448 = scmp.lt.s32.totalorder %s25, 1
      %s449 = scalar_select %p448, %s25, 1
      %s450 = smul.addr %s449, 8
      %s451 = scalar_lea.vmem %s0, %s450
      %p452 = pneg %p46
      %p453 = pneg %p43
      %p454 = scmp.lt.s32.totalorder %s25, 1
      %s455 = scalar_select %p454, %s25, 1
      %s456 = smul.addr %s455, 8
      %s457 = scalar_lea.vmem %s1, %s456
      %p458 = pneg %p72
      %p459 = pneg %p69
      %s460 = smul.u32 2, %s25
      %p461 = scmp.lt.s32.totalorder %s460, 3
      %s462 = scalar_select %p461, %s460, 3
      %s463 = smul.addr %s462, 8
      %s464 = scalar_lea.vmem %s2, %s463
      %p465 = pneg %p98
      %p466 = pneg %p95
      %s467 = smul.u32 2, %s25
      %p468 = scmp.lt.s32.totalorder %s467, 3
      %s469 = scalar_select %p468, %s467, 3
      %s470 = smul.addr %s469, 8
      %s471 = scalar_lea.vmem %s3, %s470
      %p472 = pneg %p124
      %p473 = pneg %p121
      %p474 = pneg %p145
      %p475 = pneg %p142
      %p476 = pneg %p166
      %p477 = pneg %p163
      %p478 = pneg %p187
      %p479 = pneg %p184
      %p480 = pneg %p208
      %p481 = pneg %p205
      %p482 = pneg %p229
      %p483 = pneg %p226
      %p484 = pneg %p250
      %p485 = pneg %p247
      %p486 = pneg %p271
      %p487 = pneg %p268
      %p488 = pneg %p292
      %p489 = pneg %p289
      %p490 = pneg %p313
      %p491 = pneg %p310
      %p492 = pneg %p334
      %p493 = pneg %p331
      %p494 = pneg %p360
      %p495 = pneg %p357
      %p496 = scmp.lt.s32.totalorder %s25, 1
      %s497 = scalar_select %p496, %s25, 1
      %s498 = smul.addr %s497, 8
      %s499 = scalar_lea.vmem %s14, %s498
      %p500 = scmp.lt.s32.totalorder %s25, 1
      %s501 = scalar_select %p500, %s25, 1
      %s502 = smul.addr %s501, 8
      %s503 = scalar_lea.vmem %s0, %s502
      %p504 = scmp.lt.s32.totalorder %s25, 1
      %s505 = scalar_select %p504, %s25, 1
      %s506 = smul.addr %s505, 8
      %s507 = scalar_lea.vmem %s1, %s506
      %s508 = smul.u32 2, %s25
      %p509 = scmp.lt.s32.totalorder %s508, 3
      %s510 = scalar_select %p509, %s508, 3
      %s511 = smul.addr %s510, 8
      %s512 = scalar_lea.vmem %s2, %s511
      %s513 = smul.u32 2, %s25
      %s514 = smul.u32 2, %s25
      %p515 = scmp.lt.s32.totalorder %s514, 3
      %s516 = scalar_select %p515, %s514, 3
      %s517 = smul.addr %s516, 8
      %s518 = scalar_lea.vmem %s3, %s517
      %s519 = smul.u32 2, %s25
      %p520 = scmp.lt.s32.totalorder %s25, 1
      %s521 = scalar_select %p520, %s25, 1
      %s522 = smul.addr %s521, 8
      %s523 = scalar_lea.vmem %s14, %s522
      %v524 = vld [vmem:[%s503] sm:$0xff]
      %v525 = vld [vmem:[%s507] sm:$0xff]
      %v526 = vadd.f32 %v524, %v525
      %v527 = vld [vmem:[%s4] sm:$0xff]
      %v528 = vld [vmem:[%s4 + $0x8] sm:$0xff]
      %v529 = vld [vmem:[%s4 + $0x10] sm:$0xff]
      %v530 = vld [vmem:[%s4 + $0x18] sm:$0xff]
      %v531 = vld [vmem:[%s5] sm:$0x1]
      %v533 = vlaneseq
      %v534 = vshrl.u32 %v533, 7
      %v535 = vsub.s32 0, %v534
      %v536 = vrot.slane %v531, %v535
      %vm538 = vcmask 261120
      %v540 = vsel %vm538, %v526, 0
      %542 = vmatprep.subr.mxu0 0.0
      %543 = vmatpush1.msra.mxu0 %v527
      %544 = vmatprep.subr.mxu0 0.0
      %545 = vmatpush1.msra.mxu0 %v528
      %546 = vmatprep.subr.mxu0 0.0
      %547 = vmatpush1.msra.mxu0 %v529
      %548 = vmatprep.subr.mxu0 0.0
      %549 = vmatpush1.msra.mxu0 %v530
      %550 = vmatprep.subr.mxu0 0.0
      %551 = vmatpush1.msra.mxu0 0.0
      %552 = vmatprep.subr.mxu0 0.0
      %553 = vmatpush1.msra.mxu0 0.0
      %554 = vmatprep.subr.mxu0 0.0
      %555 = vmatpush1.msra.mxu0 0.0
      %556 = vmatprep.subr.mxu0 0.0
      %557 = vmatpush1.msra.mxu0 0.0
      %558 = vmatprep.subr.mxu0 0.0
      %559 = vmatpush1.msra.mxu0 0.0
      %560 = vmatprep.subr.mxu0 0.0
      %561 = vmatpush1.msra.mxu0 0.0
      %562 = vmatprep.subr.mxu0 0.0
      %563 = vmatpush1.msra.mxu0 0.0
      %564 = vmatprep.subr.mxu0 0.0
      %565 = vmatpush1.msra.mxu0 0.0
      %566 = vmatprep.subr.mxu0 0.0
      %567 = vmatpush1.msra.mxu0 0.0
      %568 = vmatprep.subr.mxu0 0.0
      %569 = vmatpush1.msra.mxu0 0.0
      %570 = vmatprep.subr.mxu0 0.0
      %571 = vmatpush1.msra.mxu0 0.0
      %572 = vmatprep.subr.mxu0 0.0
      %573 = vmatpush1.msra.mxu0 0.0
      %574 = vmatprep.subr.mxu0 0.0
      %575 = vmatpush1.msra.mxu0 0.0
      %576 = vmatprep.subr.mxu0 0.0
      %577 = vmatpush1.msra.mxu0 0.0
      %578 = vmatprep.subr.mxu0 0.0
      %579 = vmatpush1.msra.mxu0 0.0
      %580 = vmatprep.subr.mxu0 0.0
      %581 = vmatpush1.msra.mxu0 0.0
      %582 = vmatprep.subr.mxu0 0.0
      %583 = vmatpush1.msra.mxu0 0.0
      %584 = vmatprep.subr.mxu0 0.0
      %585 = vmatpush1.msra.mxu0 0.0
      %586 = vmatprep.subr.mxu0 0.0
      %587 = vmatpush1.msra.mxu0 0.0
      %588 = vmatprep.subr.mxu0 0.0
      %589 = vmatpush1.msra.mxu0 0.0
      %590 = vmatprep.subr.mxu0 0.0
      %591 = vmatpush1.msra.mxu0 0.0
      %592 = vmatprep.subr.mxu0 0.0
      %593 = vmatpush1.msra.mxu0 0.0
      %594 = vmatprep.subr.mxu0 0.0
      %595 = vmatpush1.msra.mxu0 0.0
      %596 = vmatprep.subr.mxu0 0.0
      %597 = vmatpush1.msra.mxu0 0.0
      %598 = vmatprep.subr.mxu0 0.0
      %599 = vmatpush1.msra.mxu0 0.0
      %600 = vmatprep.subr.mxu0 0.0
      %601 = vmatpush1.msra.mxu0 0.0
      %602 = vmatprep.subr.mxu0 0.0
      %603 = vmatpush1.msra.mxu0 0.0
      %604 = vmatprep.subr.mxu0 0.0
      %605 = vmatpush1.msra.mxu0 0.0
      %606 = vmatprep.mubr.f32.mxu0 0.0
      %607 = vmatmul.mubr.f32.gmra.mrb[0].mxu0 %v540
      %v608 = vpop.f32.mrb[0].mxu0
      %v609 = vadd.f32 %v536, %v608
      %v610 = vpop.f32.mrb[0].mxu0
      %611 = vdwg.mxu0
      %v612 = vld [vmem:[%s512] sm:$0xff]
      %v613 = vld [vmem:[%s512 + $0x8] sm:$0xff]
      %v614 = vld [vmem:[%s6] sm:$0xff]
      %v615 = vld [vmem:[%s6 + $0x8] sm:$0xff]
      %v616 = vld [vmem:[%s6 + $0x10] sm:$0xff]
      %v617 = vld [vmem:[%s6 + $0x18] sm:$0xff]
      %v618 = vld [vmem:[%s7] sm:$0x1]
      %v620 = vlaneseq
      %v621 = vshrl.u32 %v620, 7
      %v622 = vsub.s32 0, %v621
      %v623 = vrot.slane %v618, %v622
      %v626 = vsel %vm538, %v612, 0
      %v629 = vsel %vm538, %v613, 0
      %631 = vmatprep.subr.mxu0 0.0
      %632 = vmatpush1.msra.mxu0 %v614
      %633 = vmatprep.subr.mxu0 0.0
      %634 = vmatpush1.msra.mxu0 %v615
      %635 = vmatprep.subr.mxu0 0.0
      %636 = vmatpush1.msra.mxu0 %v616
      %637 = vmatprep.subr.mxu0 0.0
      %638 = vmatpush1.msra.mxu0 %v617
      %639 = vmatprep.subr.mxu0 0.0
      %640 = vmatpush1.msra.mxu0 0.0
      %641 = vmatprep.subr.mxu0 0.0
      %642 = vmatpush1.msra.mxu0 0.0
      %643 = vmatprep.subr.mxu0 0.0
      %644 = vmatpush1.msra.mxu0 0.0
      %645 = vmatprep.subr.mxu0 0.0
      %646 = vmatpush1.msra.mxu0 0.0
      %647 = vmatprep.subr.mxu0 0.0
      %648 = vmatpush1.msra.mxu0 0.0
      %649 = vmatprep.subr.mxu0 0.0
      %650 = vmatpush1.msra.mxu0 0.0
      %651 = vmatprep.subr.mxu0 0.0
      %652 = vmatpush1.msra.mxu0 0.0
      %653 = vmatprep.subr.mxu0 0.0
      %654 = vmatpush1.msra.mxu0 0.0
      %655 = vmatprep.subr.mxu0 0.0
      %656 = vmatpush1.msra.mxu0 0.0
      %657 = vmatprep.subr.mxu0 0.0
      %658 = vmatpush1.msra.mxu0 0.0
      %659 = vmatprep.subr.mxu0 0.0
      %660 = vmatpush1.msra.mxu0 0.0
      %661 = vmatprep.subr.mxu0 0.0
      %662 = vmatpush1.msra.mxu0 0.0
      %663 = vmatprep.subr.mxu0 0.0
      %664 = vmatpush1.msra.mxu0 0.0
      %665 = vmatprep.subr.mxu0 0.0
      %666 = vmatpush1.msra.mxu0 0.0
      %667 = vmatprep.subr.mxu0 0.0
      %668 = vmatpush1.msra.mxu0 0.0
      %669 = vmatprep.subr.mxu0 0.0
      %670 = vmatpush1.msra.mxu0 0.0
      %671 = vmatprep.subr.mxu0 0.0
      %672 = vmatpush1.msra.mxu0 0.0
      %673 = vmatprep.subr.mxu0 0.0
      %674 = vmatpush1.msra.mxu0 0.0
      %675 = vmatprep.subr.mxu0 0.0
      %676 = vmatpush1.msra.mxu0 0.0
      %677 = vmatprep.subr.mxu0 0.0
      %678 = vmatpush1.msra.mxu0 0.0
      %679 = vmatprep.subr.mxu0 0.0
      %680 = vmatpush1.msra.mxu0 0.0
      %681 = vmatprep.subr.mxu0 0.0
      %682 = vmatpush1.msra.mxu0 0.0
      %683 = vmatprep.subr.mxu0 0.0
      %684 = vmatpush1.msra.mxu0 0.0
      %685 = vmatprep.subr.mxu0 0.0
      %686 = vmatpush1.msra.mxu0 0.0
      %687 = vmatprep.subr.mxu0 0.0
      %688 = vmatpush1.msra.mxu0 0.0
      %689 = vmatprep.subr.mxu0 0.0
      %690 = vmatpush1.msra.mxu0 0.0
      %691 = vmatprep.subr.mxu0 0.0
      %692 = vmatpush1.msra.mxu0 0.0
      %693 = vmatprep.subr.mxu0 0.0
      %694 = vmatpush1.msra.mxu0 0.0
      %695 = vmatprep.mubr.f32.mxu0 0.0
      %696 = vmatmul.mubr.f32.gmra.mrb[0].mxu0 %v626
      %v697 = vpop.f32.mrb[0].mxu0
      %v698 = vadd.f32 %v623, %v697
      %v699 = vpop.f32.mrb[0].mxu0
      %700 = vmatprep.mubr.f32.mxu0 0.0
      %701 = vmatmul.mubr.f32.gmra.mrb[0].mxu0 %v629
      %v702 = vpop.f32.mrb[0].mxu0
      %v703 = vadd.f32 %v623, %v702
      %v704 = vpop.f32.mrb[0].mxu0
      %705 = vdwg.mxu0
      %v706 = vld [vmem:[%s518] sm:$0xff]
      %v707 = vld [vmem:[%s518 + $0x8] sm:$0xff]
      %v708 = vld [vmem:[%s8] sm:$0xff]
      %v709 = vld [vmem:[%s8 + $0x8] sm:$0xff]
      %v710 = vld [vmem:[%s8 + $0x10] sm:$0xff]
      %v711 = vld [vmem:[%s8 + $0x18] sm:$0xff]
      %v712 = vld [vmem:[%s9] sm:$0x1]
      %v714 = vlaneseq
      %v715 = vshrl.u32 %v714, 7
      %v716 = vsub.s32 0, %v715
      %v717 = vrot.slane %v712, %v716
      %v720 = vsel %vm538, %v706, 0
      %v723 = vsel %vm538, %v707, 0
      %725 = vmatprep.subr.mxu0 0.0
      %726 = vmatpush1.msra.mxu0 %v708
      %727 = vmatprep.subr.mxu0 0.0
      %728 = vmatpush1.msra.mxu0 %v709
      %729 = vmatprep.subr.mxu0 0.0
      %730 = vmatpush1.msra.mxu0 %v710
      %731 = vmatprep.subr.mxu0 0.0
      %732 = vmatpush1.msra.mxu0 %v711
      %733 = vmatprep.subr.mxu0 0.0
      %734 = vmatpush1.msra.mxu0 0.0
      %735 = vmatprep.subr.mxu0 0.0
      %736 = vmatpush1.msra.mxu0 0.0
      %737 = vmatprep.subr.mxu0 0.0
      %738 = vmatpush1.msra.mxu0 0.0
      %739 = vmatprep.subr.mxu0 0.0
      %740 = vmatpush1.msra.mxu0 0.0
      %741 = vmatprep.subr.mxu0 0.0
      %742 = vmatpush1.msra.mxu0 0.0
      %743 = vmatprep.subr.mxu0 0.0
      %744 = vmatpush1.msra.mxu0 0.0
      %745 = vmatprep.subr.mxu0 0.0
      %746 = vmatpush1.msra.mxu0 0.0
      %747 = vmatprep.subr.mxu0 0.0
      %748 = vmatpush1.msra.mxu0 0.0
      %749 = vmatprep.subr.mxu0 0.0
      %750 = vmatpush1.msra.mxu0 0.0
      %751 = vmatprep.subr.mxu0 0.0
      %752 = vmatpush1.msra.mxu0 0.0
      %753 = vmatprep.subr.mxu0 0.0
      %754 = vmatpush1.msra.mxu0 0.0
      %755 = vmatprep.subr.mxu0 0.0
      %756 = vmatpush1.msra.mxu0 0.0
      %757 = vmatprep.subr.mxu0 0.0
      %758 = vmatpush1.msra.mxu0 0.0
      %759 = vmatprep.subr.mxu0 0.0
      %760 = vmatpush1.msra.mxu0 0.0
      %761 = vmatprep.subr.mxu0 0.0
      %762 = vmatpush1.msra.mxu0 0.0
      %763 = vmatprep.subr.mxu0 0.0
      %764 = vmatpush1.msra.mxu0 0.0
      %765 = vmatprep.subr.mxu0 0.0
      %766 = vmatpush1.msra.mxu0 0.0
      %767 = vmatprep.subr.mxu0 0.0
      %768 = vmatpush1.msra.mxu0 0.0
      %769 = vmatprep.subr.mxu0 0.0
      %770 = vmatpush1.msra.mxu0 0.0
      %771 = vmatprep.subr.mxu0 0.0
      %772 = vmatpush1.msra.mxu0 0.0
      %773 = vmatprep.subr.mxu0 0.0
      %774 = vmatpush1.msra.mxu0 0.0
      %775 = vmatprep.subr.mxu0 0.0
      %776 = vmatpush1.msra.mxu0 0.0
      %777 = vmatprep.subr.mxu0 0.0
      %778 = vmatpush1.msra.mxu0 0.0
      %779 = vmatprep.subr.mxu0 0.0
      %780 = vmatpush1.msra.mxu0 0.0
      %781 = vmatprep.subr.mxu0 0.0
      %782 = vmatpush1.msra.mxu0 0.0
      %783 = vmatprep.subr.mxu0 0.0
      %784 = vmatpush1.msra.mxu0 0.0
      %785 = vmatprep.subr.mxu0 0.0
      %786 = vmatpush1.msra.mxu0 0.0
      %787 = vmatprep.subr.mxu0 0.0
      %788 = vmatpush1.msra.mxu0 0.0
      %789 = vmatprep.mubr.f32.mxu0 0.0
      %790 = vmatmul.mubr.f32.gmra.mrb[0].mxu0 %v720
      %v791 = vpop.f32.mrb[0].mxu0
      %v792 = vadd.f32 %v717, %v791
      %v793 = vpop.f32.mrb[0].mxu0
      %794 = vmatprep.mubr.f32.mxu0 0.0
      %795 = vmatmul.mubr.f32.gmra.mrb[0].mxu0 %v723
      %v796 = vpop.f32.mrb[0].mxu0
      %v797 = vadd.f32 %v717, %v796
      %v798 = vpop.f32.mrb[0].mxu0
      %799 = vdwg.mxu0
      %vm800 = vcmask 64512
      %v802 = vsel %vm800, %v609, 0
      %v805 = vsel %vm800, %v698, 0
      %v808 = vsel %vm800, %v703, 0
      %810 = vmatprep.subr.mxu0 0.0
      %811 = vmatpush1.xpose.msra.mxu0 %v805
      %812 = vmatprep.subr.mxu0 0.0
      %813 = vmatpush1.xpose.msra.mxu0 %v808
      %814 = vmatprep.subr.mxu0 0.0
      %815 = vmatpush1.xpose.msra.mxu0 0.0
      %816 = vmatprep.subr.mxu0 0.0
      %817 = vmatpush1.xpose.msra.mxu0 0.0
      %818 = vmatprep.subr.mxu0 0.0
      %819 = vmatpush1.xpose.msra.mxu0 0.0
      %820 = vmatprep.subr.mxu0 0.0
      %821 = vmatpush1.xpose.msra.mxu0 0.0
      %822 = vmatprep.subr.mxu0 0.0
      %823 = vmatpush1.xpose.msra.mxu0 0.0
      %824 = vmatprep.subr.mxu0 0.0
      %825 = vmatpush1.xpose.msra.mxu0 0.0
      %826 = vmatprep.subr.mxu0 0.0
      %827 = vmatpush1.xpose.msra.mxu0 0.0
      %828 = vmatprep.subr.mxu0 0.0
      %829 = vmatpush1.xpose.msra.mxu0 0.0
      %830 = vmatprep.subr.mxu0 0.0
      %831 = vmatpush1.xpose.msra.mxu0 0.0
      %832 = vmatprep.subr.mxu0 0.0
      %833 = vmatpush1.xpose.msra.mxu0 0.0
      %834 = vmatprep.subr.mxu0 0.0
      %835 = vmatpush1.xpose.msra.mxu0 0.0
      %836 = vmatprep.subr.mxu0 0.0
      %837 = vmatpush1.xpose.msra.mxu0 0.0
      %838 = vmatprep.subr.mxu0 0.0
      %839 = vmatpush1.xpose.msra.mxu0 0.0
      %840 = vmatprep.subr.mxu0 0.0
      %841 = vmatpush1.xpose.msra.mxu0 0.0
      %842 = vmatprep.subr.mxu0 0.0
      %843 = vmatpush1.xpose.msra.mxu0 0.0
      %844 = vmatprep.subr.mxu0 0.0
      %845 = vmatpush1.xpose.msra.mxu0 0.0
      %846 = vmatprep.subr.mxu0 0.0
      %847 = vmatpush1.xpose.msra.mxu0 0.0
      %848 = vmatprep.subr.mxu0 0.0
      %849 = vmatpush1.xpose.msra.mxu0 0.0
      %850 = vmatprep.subr.mxu0 0.0
      %851 = vmatpush1.xpose.msra.mxu0 0.0
      %852 = vmatprep.subr.mxu0 0.0
      %853 = vmatpush1.xpose.msra.mxu0 0.0
      %854 = vmatprep.subr.mxu0 0.0
      %855 = vmatpush1.xpose.msra.mxu0 0.0
      %856 = vmatprep.subr.mxu0 0.0
      %857 = vmatpush1.xpose.msra.mxu0 0.0
      %858 = vmatprep.subr.mxu0 0.0
      %859 = vmatpush1.xpose.msra.mxu0 0.0
      %860 = vmatprep.subr.mxu0 0.0
      %861 = vmatpush1.xpose.msra.mxu0 0.0
      %862 = vmatprep.subr.mxu0 0.0
      %863 = vmatpush1.xpose.msra.mxu0 0.0
      %864 = vmatprep.subr.mxu0 0.0
      %865 = vmatpush1.xpose.msra.mxu0 0.0
      %866 = vmatprep.subr.mxu0 0.0
      %867 = vmatpush1.xpose.msra.mxu0 0.0
      %868 = vmatprep.subr.mxu0 0.0
      %869 = vmatpush1.xpose.msra.mxu0 0.0
      %870 = vmatprep.subr.mxu0 0.0
      %871 = vmatpush1.xpose.msra.mxu0 0.0
      %872 = vmatprep.subr.mxu0 0.0
      %873 = vmatpush1.xpose.msra.mxu0 0.0
      %874 = vmatprep.mubr.f32.mxu0 0.0
      %875 = vmatmul.mubr.f32.gmra.mrb[0].mxu0 %v802
      %v876 = vpop.f32.mrb[0].mxu0
      %v877 = vadd.f32 0.0, %v876
      %v878 = vpop.f32.mrb[0].mxu0
      %879 = vdwg.mxu0
      %vm880 = vcmask 130048
      %v881 = vsel %vm880, %v877, -inf
      %882 = vmax.xlane.f32.xlu0 %v881
      %v883 = vpop.xlane.xlu0 %882
      %v884 = vsub.f32 %v877, %v883
      %v885 = vmul.f32 %v884, 1.442695
      %v886 = vpow.pop %v885
      %v887 = vsel %vm880, %v886, 0.0
      %888 = vadd.xlane.f32.xlu0 %v887
      %v889 = vpop.xlane.xlu0 %888
      %v890 = vrcp.pop %v889
      %v891 = vmul.f32 %v886, %v890
      %v893 = vsel %vm880, %v891, 0
      %895 = vmatprep.subr.mxu0 0.0
      %896 = vmatpush1.msra.mxu0 %v792
      %897 = vmatprep.subr.mxu0 0.0
      %898 = vmatpush1.msra.mxu0 %v797
      %899 = vmatprep.subr.mxu0 0.0
      %900 = vmatpush1.msra.mxu0 0.0
      %901 = vmatprep.subr.mxu0 0.0
      %902 = vmatpush1.msra.mxu0 0.0
      %903 = vmatprep.subr.mxu0 0.0
      %904 = vmatpush1.msra.mxu0 0.0
      %905 = vmatprep.subr.mxu0 0.0
      %906 = vmatpush1.msra.mxu0 0.0
      %907 = vmatprep.subr.mxu0 0.0
      %908 = vmatpush1.msra.mxu0 0.0
      %909 = vmatprep.subr.mxu0 0.0
      %910 = vmatpush1.msra.mxu0 0.0
      %911 = vmatprep.subr.mxu0 0.0
      %912 = vmatpush1.msra.mxu0 0.0
      %913 = vmatprep.subr.mxu0 0.0
      %914 = vmatpush1.msra.mxu0 0.0
      %915 = vmatprep.subr.mxu0 0.0
      %916 = vmatpush1.msra.mxu0 0.0
      %917 = vmatprep.subr.mxu0 0.0
      %918 = vmatpush1.msra.mxu0 0.0
      %919 = vmatprep.subr.mxu0 0.0
      %920 = vmatpush1.msra.mxu0 0.0
      %921 = vmatprep.subr.mxu0 0.0
      %922 = vmatpush1.msra.mxu0 0.0
      %923 = vmatprep.subr.mxu0 0.0
      %924 = vmatpush1.msra.mxu0 0.0
      %925 = vmatprep.subr.mxu0 0.0
      %926 = vmatpush1.msra.mxu0 0.0
      %927 = vmatprep.subr.mxu0 0.0
      %928 = vmatpush1.msra.mxu0 0.0
      %929 = vmatprep.subr.mxu0 0.0
      %930 = vmatpush1.msra.mxu0 0.0
      %931 = vmatprep.subr.mxu0 0.0
      %932 = vmatpush1.msra.mxu0 0.0
      %933 = vmatprep.subr.mxu0 0.0
      %934 = vmatpush1.msra.mxu0 0.0
      %935 = vmatprep.subr.mxu0 0.0
      %936 = vmatpush1.msra.mxu0 0.0
      %937 = vmatprep.subr.mxu0 0.0
      %938 = vmatpush1.msra.mxu0 0.0
      %939 = vmatprep.subr.mxu0 0.0
      %940 = vmatpush1.msra.mxu0 0.0
      %941 = vmatprep.subr.mxu0 0.0
      %942 = vmatpush1.msra.mxu0 0.0
      %943 = vmatprep.subr.mxu0 0.0
      %944 = vmatpush1.msra.mxu0 0.0
      %945 = vmatprep.subr.mxu0 0.0
      %946 = vmatpush1.msra.mxu0 0.0
      %947 = vmatprep.subr.mxu0 0.0
      %948 = vmatpush1.msra.mxu0 0.0
      %949 = vmatprep.subr.mxu0 0.0
      %950 = vmatpush1.msra.mxu0 0.0
      %951 = vmatprep.subr.mxu0 0.0
      %952 = vmatpush1.msra.mxu0 0.0
      %953 = vmatprep.subr.mxu0 0.0
      %954 = vmatpush1.msra.mxu0 0.0
      %955 = vmatprep.subr.mxu0 0.0
      %956 = vmatpush1.msra.mxu0 0.0
      %957 = vmatprep.subr.mxu0 0.0
      %958 = vmatpush1.msra.mxu0 0.0
      %959 = vmatprep.mubr.f32.mxu0 0.0
      %960 = vmatmul.mubr.f32.gmra.mrb[0].mxu0 %v893
      %v961 = vpop.f32.mrb[0].mxu0
      %v962 = vadd.f32 0.0, %v961
      %v963 = vpop.f32.mrb[0].mxu0
      %964 = vdwg.mxu0
      %965 = vst.msk [vmem:[#allocation2] sm:$0xff] %vm800, %v962
      %966 = vrot.lane.b32.xlu0 %v609, 120
      %v967 = vpop.permute.xlu0 %966
      %968 = vrot.lane.b32.xlu0 %v698, 120
      %v969 = vpop.permute.xlu0 %968
      %970 = vrot.lane.b32.xlu0 %v703, 120
      %v971 = vpop.permute.xlu0 %970
      %v972 = vsel %vm800, %v967, 0
      %v974 = vsel %vm800, %v969, 0
      %v976 = vsel %vm800, %v971, 0
      %978 = vmatprep.subr.mxu0 0.0
      %979 = vmatpush1.xpose.msra.mxu0 %v974
      %980 = vmatprep.subr.mxu0 0.0
      %981 = vmatpush1.xpose.msra.mxu0 %v976
      %982 = vmatprep.subr.mxu0 0.0
      %983 = vmatpush1.xpose.msra.mxu0 0.0
      %984 = vmatprep.subr.mxu0 0.0
      %985 = vmatpush1.xpose.msra.mxu0 0.0
      %986 = vmatprep.subr.mxu0 0.0
      %987 = vmatpush1.xpose.msra.mxu0 0.0
      %988 = vmatprep.subr.mxu0 0.0
      %989 = vmatpush1.xpose.msra.mxu0 0.0
      %990 = vmatprep.subr.mxu0 0.0
      %991 = vmatpush1.xpose.msra.mxu0 0.0
      %992 = vmatprep.subr.mxu0 0.0
      %993 = vmatpush1.xpose.msra.mxu0 0.0
      %994 = vmatprep.subr.mxu0 0.0
      %995 = vmatpush1.xpose.msra.mxu0 0.0
      %996 = vmatprep.subr.mxu0 0.0
      %997 = vmatpush1.xpose.msra.mxu0 0.0
      %998 = vmatprep.subr.mxu0 0.0
      %999 = vmatpush1.xpose.msra.mxu0 0.0
      %1000 = vmatprep.subr.mxu0 0.0
      %1001 = vmatpush1.xpose.msra.mxu0 0.0
      %1002 = vmatprep.subr.mxu0 0.0
      %1003 = vmatpush1.xpose.msra.mxu0 0.0
      %1004 = vmatprep.subr.mxu0 0.0
      %1005 = vmatpush1.xpose.msra.mxu0 0.0
      %1006 = vmatprep.subr.mxu0 0.0
      %1007 = vmatpush1.xpose.msra.mxu0 0.0
      %1008 = vmatprep.subr.mxu0 0.0
      %1009 = vmatpush1.xpose.msra.mxu0 0.0
      %1010 = vmatprep.subr.mxu0 0.0
      %1011 = vmatpush1.xpose.msra.mxu0 0.0
      %1012 = vmatprep.subr.mxu0 0.0
      %1013 = vmatpush1.xpose.msra.mxu0 0.0
      %1014 = vmatprep.subr.mxu0 0.0
      %1015 = vmatpush1.xpose.msra.mxu0 0.0
      %1016 = vmatprep.subr.mxu0 0.0
      %1017 = vmatpush1.xpose.msra.mxu0 0.0
      %1018 = vmatprep.subr.mxu0 0.0
      %1019 = vmatpush1.xpose.msra.mxu0 0.0
      %1020 = vmatprep.subr.mxu0 0.0
      %1021 = vmatpush1.xpose.msra.mxu0 0.0
      %1022 = vmatprep.subr.mxu0 0.0
      %1023 = vmatpush1.xpose.msra.mxu0 0.0
      %1024 = vmatprep.subr.mxu0 0.0
      %1025 = vmatpush1.xpose.msra.mxu0 0.0
      %1026 = vmatprep.subr.mxu0 0.0
      %1027 = vmatpush1.xpose.msra.mxu0 0.0
      %1028 = vmatprep.subr.mxu0 0.0
      %1029 = vmatpush1.xpose.msra.mxu0 0.0
      %1030 = vmatprep.subr.mxu0 0.0
      %1031 = vmatpush1.xpose.msra.mxu0 0.0
      %1032 = vmatprep.subr.mxu0 0.0
      %1033 = vmatpush1.xpose.msra.mxu0 0.0
      %1034 = vmatprep.subr.mxu0 0.0
      %1035 = vmatpush1.xpose.msra.mxu0 0.0
      %1036 = vmatprep.subr.mxu0 0.0
      %1037 = vmatpush1.xpose.msra.mxu0 0.0
      %1038 = vmatprep.subr.mxu0 0.0
      %1039 = vmatpush1.xpose.msra.mxu0 0.0
      %1040 = vmatprep.subr.mxu0 0.0
      %1041 = vmatpush1.xpose.msra.mxu0 0.0
      %1042 = vmatprep.mubr.f32.mxu0 0.0
      %1043 = vmatmul.mubr.f32.gmra.mrb[0].mxu0 %v972
      %v1044 = vpop.f32.mrb[0].mxu0
      %v1045 = vadd.f32 0.0, %v1044
      %v1046 = vpop.f32.mrb[0].mxu0
      %1047 = vdwg.mxu0
      %v1048 = vsel %vm880, %v1045, -inf
      %1049 = vmax.xlane.f32.xlu0 %v1048
      %v1050 = vpop.xlane.xlu0 %1049
      %v1051 = vsub.f32 %v1045, %v1050
      %v1052 = vmul.f32 %v1051, 1.442695
      %v1053 = vpow.pop %v1052
      %v1054 = vsel %vm880, %v1053, 0.0
      %1055 = vadd.xlane.f32.xlu0 %v1054
      %v1056 = vpop.xlane.xlu0 %1055
      %v1057 = vrcp.pop %v1056
      %v1058 = vmul.f32 %v1053, %v1057
      %1061 = vrot.lane.b32.xlu0 %v792, 120
      %v1062 = vpop.permute.xlu0 %1061
      %1063 = vrot.lane.b32.xlu0 %v797, 120
      %v1064 = vpop.permute.xlu0 %1063
      %v1068 = vsel %vm880, %v1058, 0
      %1070 = vmatprep.subr.mxu0 0.0
      %1071 = vmatpush1.msra.mxu0 %v1062
      %1072 = vmatprep.subr.mxu0 0.0
      %1073 = vmatpush1.msra.mxu0 %v1064
      %1074 = vmatprep.subr.mxu0 0.0
      %1075 = vmatpush1.msra.mxu0 0.0
      %1076 = vmatprep.subr.mxu0 0.0
      %1077 = vmatpush1.msra.mxu0 0.0
      %1078 = vmatprep.subr.mxu0 0.0
      %1079 = vmatpush1.msra.mxu0 0.0
      %1080 = vmatprep.subr.mxu0 0.0
      %1081 = vmatpush1.msra.mxu0 0.0
      %1082 = vmatprep.subr.mxu0 0.0
      %1083 = vmatpush1.msra.mxu0 0.0
      %1084 = vmatprep.subr.mxu0 0.0
      %1085 = vmatpush1.msra.mxu0 0.0
      %1086 = vmatprep.subr.mxu0 0.0
      %1087 = vmatpush1.msra.mxu0 0.0
      %1088 = vmatprep.subr.mxu0 0.0
      %1089 = vmatpush1.msra.mxu0 0.0
      %1090 = vmatprep.subr.mxu0 0.0
      %1091 = vmatpush1.msra.mxu0 0.0
      %1092 = vmatprep.subr.mxu0 0.0
      %1093 = vmatpush1.msra.mxu0 0.0
      %1094 = vmatprep.subr.mxu0 0.0
      %1095 = vmatpush1.msra.mxu0 0.0
      %1096 = vmatprep.subr.mxu0 0.0
      %1097 = vmatpush1.msra.mxu0 0.0
      %1098 = vmatprep.subr.mxu0 0.0
      %1099 = vmatpush1.msra.mxu0 0.0
      %1100 = vmatprep.subr.mxu0 0.0
      %1101 = vmatpush1.msra.mxu0 0.0
      %1102 = vmatprep.subr.mxu0 0.0
      %1103 = vmatpush1.msra.mxu0 0.0
      %1104 = vmatprep.subr.mxu0 0.0
      %1105 = vmatpush1.msra.mxu0 0.0
      %1106 = vmatprep.subr.mxu0 0.0
      %1107 = vmatpush1.msra.mxu0 0.0
      %1108 = vmatprep.subr.mxu0 0.0
      %1109 = vmatpush1.msra.mxu0 0.0
      %1110 = vmatprep.subr.mxu0 0.0
      %1111 = vmatpush1.msra.mxu0 0.0
      %1112 = vmatprep.subr.mxu0 0.0
      %1113 = vmatpush1.msra.mxu0 0.0
      %1114 = vmatprep.subr.mxu0 0.0
      %1115 = vmatpush1.msra.mxu0 0.0
      %1116 = vmatprep.subr.mxu0 0.0
      %1117 = vmatpush1.msra.mxu0 0.0
      %1118 = vmatprep.subr.mxu0 0.0
      %1119 = vmatpush1.msra.mxu0 0.0
      %1120 = vmatprep.subr.mxu0 0.0
      %1121 = vmatpush1.msra.mxu0 0.0
      %1122 = vmatprep.subr.mxu0 0.0
      %1123 = vmatpush1.msra.mxu0 0.0
      %1124 = vmatprep.subr.mxu0 0.0
      %1125 = vmatpush1.msra.mxu0 0.0
      %1126 = vmatprep.subr.mxu0 0.0
      %1127 = vmatpush1.msra.mxu0 0.0
      %1128 = vmatprep.subr.mxu0 0.0
      %1129 = vmatpush1.msra.mxu0 0.0
      %1130 = vmatprep.subr.mxu0 0.0
      %1131 = vmatpush1.msra.mxu0 0.0
      %1132 = vmatprep.subr.mxu0 0.0
      %1133 = vmatpush1.msra.mxu0 0.0
      %1134 = vmatprep.mubr.f32.mxu0 0.0
      %1135 = vmatmul.mubr.f32.gmra.mrb[0].mxu0 %v1068
      %v1136 = vpop.f32.mrb[0].mxu0
      %v1137 = vadd.f32 0.0, %v1136
      %v1138 = vpop.f32.mrb[0].mxu0
      %1139 = vdwg.mxu0
      %1141 = vrot.lane.b32.xlu0 %v1137, 8
      %v1142 = vpop.permute.xlu0 %1141
      %vm1144 = vcmask 130112
      %1145 = vst.msk [vmem:[#allocation2] sm:$0xff] %vm1144, %v1142
      %1146 = vrot.lane.b32.xlu0 %v609, 112
      %v1147 = vpop.permute.xlu0 %1146
      %1148 = vrot.lane.b32.xlu0 %v698, 112
      %v1149 = vpop.permute.xlu0 %1148
      %1150 = vrot.lane.b32.xlu0 %v703, 112
      %v1151 = vpop.permute.xlu0 %1150
      %v1152 = vsel %vm800, %v1147, 0
      %v1154 = vsel %vm800, %v1149, 0
      %v1156 = vsel %vm800, %v1151, 0
      %1158 = vmatprep.subr.mxu0 0.0
      %1159 = vmatpush1.xpose.msra.mxu0 %v1154
      %1160 = vmatprep.subr.mxu0 0.0
      %1161 = vmatpush1.xpose.msra.mxu0 %v1156
      %1162 = vmatprep.subr.mxu0 0.0
      %1163 = vmatpush1.xpose.msra.mxu0 0.0
      %1164 = vmatprep.subr.mxu0 0.0
      %1165 = vmatpush1.xpose.msra.mxu0 0.0
      %1166 = vmatprep.subr.mxu0 0.0
      %1167 = vmatpush1.xpose.msra.mxu0 0.0
      %1168 = vmatprep.subr.mxu0 0.0
      %1169 = vmatpush1.xpose.msra.mxu0 0.0
      %1170 = vmatprep.subr.mxu0 0.0
      %1171 = vmatpush1.xpose.msra.mxu0 0.0
      %1172 = vmatprep.subr.mxu0 0.0
      %1173 = vmatpush1.xpose.msra.mxu0 0.0
      %1174 = vmatprep.subr.mxu0 0.0
      %1175 = vmatpush1.xpose.msra.mxu0 0.0
      %1176 = vmatprep.subr.mxu0 0.0
      %1177 = vmatpush1.xpose.msra.mxu0 0.0
      %1178 = vmatprep.subr.mxu0 0.0
      %1179 = vmatpush1.xpose.msra.mxu0 0.0
      %1180 = vmatprep.subr.mxu0 0.0
      %1181 = vmatpush1.xpose.msra.mxu0 0.0
      %1182 = vmatprep.subr.mxu0 0.0
      %1183 = vmatpush1.xpose.msra.mxu0 0.0
      %1184 = vmatprep.subr.mxu0 0.0
      %1185 = vmatpush1.xpose.msra.mxu0 0.0
      %1186 = vmatprep.subr.mxu0 0.0
      %1187 = vmatpush1.xpose.msra.mxu0 0.0
      %1188 = vmatprep.subr.mxu0 0.0
      %1189 = vmatpush1.xpose.msra.mxu0 0.0
      %1190 = vmatprep.subr.mxu0 0.0
      %1191 = vmatpush1.xpose.msra.mxu0 0.0
      %1192 = vmatprep.subr.mxu0 0.0
      %1193 = vmatpush1.xpose.msra.mxu0 0.0
      %1194 = vmatprep.subr.mxu0 0.0
      %1195 = vmatpush1.xpose.msra.mxu0 0.0
      %1196 = vmatprep.subr.mxu0 0.0
      %1197 = vmatpush1.xpose.msra.mxu0 0.0
      %1198 = vmatprep.subr.mxu0 0.0
      %1199 = vmatpush1.xpose.msra.mxu0 0.0
      %1200 = vmatprep.subr.mxu0 0.0
      %1201 = vmatpush1.xpose.msra.mxu0 0.0
      %1202 = vmatprep.subr.mxu0 0.0
      %1203 = vmatpush1.xpose.msra.mxu0 0.0
      %1204 = vmatprep.subr.mxu0 0.0
      %1205 = vmatpush1.xpose.msra.mxu0 0.0
      %1206 = vmatprep.subr.mxu0 0.0
      %1207 = vmatpush1.xpose.msra.mxu0 0.0
      %1208 = vmatprep.subr.mxu0 0.0
      %1209 = vmatpush1.xpose.msra.mxu0 0.0
      %1210 = vmatprep.subr.mxu0 0.0
      %1211 = vmatpush1.xpose.msra.mxu0 0.0
      %1212 = vmatprep.subr.mxu0 0.0
      %1213 = vmatpush1.xpose.msra.mxu0 0.0
      %1214 = vmatprep.subr.mxu0 0.0
      %1215 = vmatpush1.xpose.msra.mxu0 0.0
      %1216 = vmatprep.subr.mxu0 0.0
      %1217 = vmatpush1.xpose.msra.mxu0 0.0
      %1218 = vmatprep.subr.mxu0 0.0
      %1219 = vmatpush1.xpose.msra.mxu0 0.0
      %1220 = vmatprep.subr.mxu0 0.0
      %1221 = vmatpush1.xpose.msra.mxu0 0.0
      %1222 = vmatprep.mubr.f32.mxu0 0.0
      %1223 = vmatmul.mubr.f32.gmra.mrb[0].mxu0 %v1152
      %v1224 = vpop.f32.mrb[0].mxu0
      %v1225 = vadd.f32 0.0, %v1224
      %v1226 = vpop.f32.mrb[0].mxu0
      %1227 = vdwg.mxu0
      %v1228 = vsel %vm880, %v1225, -inf
      %1229 = vmax.xlane.f32.xlu0 %v1228
      %v1230 = vpop.xlane.xlu0 %1229
      %v1231 = vsub.f32 %v1225, %v1230
      %v1232 = vmul.f32 %v1231, 1.442695
      %v1233 = vpow.pop %v1232
      %v1234 = vsel %vm880, %v1233, 0.0
      %1235 = vadd.xlane.f32.xlu0 %v1234
      %v1236 = vpop.xlane.xlu0 %1235
      %v1237 = vrcp.pop %v1236
      %v1238 = vmul.f32 %v1233, %v1237
      %1239 = vrot.lane.b32.xlu0 %v792, 112
      %v1240 = vpop.permute.xlu0 %1239
      %1241 = vrot.lane.b32.xlu0 %v797, 112
      %v1242 = vpop.permute.xlu0 %1241
      %v1246 = vsel %vm880, %v1238, 0
      %1248 = vmatprep.subr.mxu0 0.0
      %1249 = vmatpush1.msra.mxu0 %v1240
      %1250 = vmatprep.subr.mxu0 0.0
      %1251 = vmatpush1.msra.mxu0 %v1242
      %1252 = vmatprep.subr.mxu0 0.0
      %1253 = vmatpush1.msra.mxu0 0.0
      %1254 = vmatprep.subr.mxu0 0.0
      %1255 = vmatpush1.msra.mxu0 0.0
      %1256 = vmatprep.subr.mxu0 0.0
      %1257 = vmatpush1.msra.mxu0 0.0
      %1258 = vmatprep.subr.mxu0 0.0
      %1259 = vmatpush1.msra.mxu0 0.0
      %1260 = vmatprep.subr.mxu0 0.0
      %1261 = vmatpush1.msra.mxu0 0.0
      %1262 = vmatprep.subr.mxu0 0.0
      %1263 = vmatpush1.msra.mxu0 0.0
      %1264 = vmatprep.subr.mxu0 0.0
      %1265 = vmatpush1.msra.mxu0 0.0
      %1266 = vmatprep.subr.mxu0 0.0
      %1267 = vmatpush1.msra.mxu0 0.0
      %1268 = vmatprep.subr.mxu0 0.0
      %1269 = vmatpush1.msra.mxu0 0.0
      %1270 = vmatprep.subr.mxu0 0.0
      %1271 = vmatpush1.msra.mxu0 0.0
      %1272 = vmatprep.subr.mxu0 0.0
      %1273 = vmatpush1.msra.mxu0 0.0
      %1274 = vmatprep.subr.mxu0 0.0
      %1275 = vmatpush1.msra.mxu0 0.0
      %1276 = vmatprep.subr.mxu0 0.0
      %1277 = vmatpush1.msra.mxu0 0.0
      %1278 = vmatprep.subr.mxu0 0.0
      %1279 = vmatpush1.msra.mxu0 0.0
      %1280 = vmatprep.subr.mxu0 0.0
      %1281 = vmatpush1.msra.mxu0 0.0
      %1282 = vmatprep.subr.mxu0 0.0
      %1283 = vmatpush1.msra.mxu0 0.0
      %1284 = vmatprep.subr.mxu0 0.0
      %1285 = vmatpush1.msra.mxu0 0.0
      %1286 = vmatprep.subr.mxu0 0.0
      %1287 = vmatpush1.msra.mxu0 0.0
      %1288 = vmatprep.subr.mxu0 0.0
      %1289 = vmatpush1.msra.mxu0 0.0
      %1290 = vmatprep.subr.mxu0 0.0
      %1291 = vmatpush1.msra.mxu0 0.0
      %1292 = vmatprep.subr.mxu0 0.0
      %1293 = vmatpush1.msra.mxu0 0.0
      %1294 = vmatprep.subr.mxu0 0.0
      %1295 = vmatpush1.msra.mxu0 0.0
      %1296 = vmatprep.subr.mxu0 0.0
      %1297 = vmatpush1.msra.mxu0 0.0
      %1298 = vmatprep.subr.mxu0 0.0
      %1299 = vmatpush1.msra.mxu0 0.0
      %1300 = vmatprep.subr.mxu0 0.0
      %1301 = vmatpush1.msra.mxu0 0.0
      %1302 = vmatprep.subr.mxu0 0.0
      %1303 = vmatpush1.msra.mxu0 0.0
      %1304 = vmatprep.subr.mxu0 0.0
      %1305 = vmatpush1.msra.mxu0 0.0
      %1306 = vmatprep.subr.mxu0 0.0
      %1307 = vmatpush1.msra.mxu0 0.0
      %1308 = vmatprep.subr.mxu0 0.0
      %1309 = vmatpush1.msra.mxu0 0.0
      %1310 = vmatprep.subr.mxu0 0.0
      %1311 = vmatpush1.msra.mxu0 0.0
      %1312 = vmatprep.mubr.f32.mxu0 0.0
      %1313 = vmatmul.mubr.f32.gmra.mrb[0].mxu0 %v1246
      %v1314 = vpop.f32.mrb[0].mxu0
      %v1315 = vadd.f32 0.0, %v1314
      %v1316 = vpop.f32.mrb[0].mxu0
      %1317 = vdwg.mxu0
      %1319 = vrot.lane.b32.xlu0 %v1315, 16
      %v1320 = vpop.permute.xlu0 %1319
      %vm1322 = vcmask 195712
      %1323 = vst.msk [vmem:[#allocation2] sm:$0xff] %vm1322, %v1320
      %1324 = vrot.lane.b32.xlu0 %v609, 104
      %v1325 = vpop.permute.xlu0 %1324
      %1326 = vrot.lane.b32.xlu0 %v698, 104
      %v1327 = vpop.permute.xlu0 %1326
      %1328 = vrot.lane.b32.xlu0 %v703, 104
      %v1329 = vpop.permute.xlu0 %1328
      %v1330 = vsel %vm800, %v1325, 0
      %v1332 = vsel %vm800, %v1327, 0
      %v1334 = vsel %vm800, %v1329, 0
      %1336 = vmatprep.subr.mxu0 0.0
      %1337 = vmatpush1.xpose.msra.mxu0 %v1332
      %1338 = vmatprep.subr.mxu0 0.0
      %1339 = vmatpush1.xpose.msra.mxu0 %v1334
      %1340 = vmatprep.subr.mxu0 0.0
      %1341 = vmatpush1.xpose.msra.mxu0 0.0
      %1342 = vmatprep.subr.mxu0 0.0
      %1343 = vmatpush1.xpose.msra.mxu0 0.0
      %1344 = vmatprep.subr.mxu0 0.0
      %1345 = vmatpush1.xpose.msra.mxu0 0.0
      %1346 = vmatprep.subr.mxu0 0.0
      %1347 = vmatpush1.xpose.msra.mxu0 0.0
      %1348 = vmatprep.subr.mxu0 0.0
      %1349 = vmatpush1.xpose.msra.mxu0 0.0
      %1350 = vmatprep.subr.mxu0 0.0
      %1351 = vmatpush1.xpose.msra.mxu0 0.0
      %1352 = vmatprep.subr.mxu0 0.0
      %1353 = vmatpush1.xpose.msra.mxu0 0.0
      %1354 = vmatprep.subr.mxu0 0.0
      %1355 = vmatpush1.xpose.msra.mxu0 0.0
      %1356 = vmatprep.subr.mxu0 0.0
      %1357 = vmatpush1.xpose.msra.mxu0 0.0
      %1358 = vmatprep.subr.mxu0 0.0
      %1359 = vmatpush1.xpose.msra.mxu0 0.0
      %1360 = vmatprep.subr.mxu0 0.0
      %1361 = vmatpush1.xpose.msra.mxu0 0.0
      %1362 = vmatprep.subr.mxu0 0.0
      %1363 = vmatpush1.xpose.msra.mxu0 0.0
      %1364 = vmatprep.subr.mxu0 0.0
      %1365 = vmatpush1.xpose.msra.mxu0 0.0
      %1366 = vmatprep.subr.mxu0 0.0
      %1367 = vmatpush1.xpose.msra.mxu0 0.0
      %1368 = vmatprep.subr.mxu0 0.0
      %1369 = vmatpush1.xpose.msra.mxu0 0.0
      %1370 = vmatprep.subr.mxu0 0.0
      %1371 = vmatpush1.xpose.msra.mxu0 0.0
      %1372 = vmatprep.subr.mxu0 0.0
      %1373 = vmatpush1.xpose.msra.mxu0 0.0
      %1374 = vmatprep.subr.mxu0 0.0
      %1375 = vmatpush1.xpose.msra.mxu0 0.0
      %1376 = vmatprep.subr.mxu0 0.0
      %1377 = vmatpush1.xpose.msra.mxu0 0.0
      %1378 = vmatprep.subr.mxu0 0.0
      %1379 = vmatpush1.xpose.msra.mxu0 0.0
      %1380 = vmatprep.subr.mxu0 0.0
      %1381 = vmatpush1.xpose.msra.mxu0 0.0
      %1382 = vmatprep.subr.mxu0 0.0
      %1383 = vmatpush1.xpose.msra.mxu0 0.0
      %1384 = vmatprep.subr.mxu0 0.0
      %1385 = vmatpush1.xpose.msra.mxu0 0.0
      %1386 = vmatprep.subr.mxu0 0.0
      %1387 = vmatpush1.xpose.msra.mxu0 0.0
      %1388 = vmatprep.subr.mxu0 0.0
      %1389 = vmatpush1.xpose.msra.mxu0 0.0
      %1390 = vmatprep.subr.mxu0 0.0
      %1391 = vmatpush1.xpose.msra.mxu0 0.0
      %1392 = vmatprep.subr.mxu0 0.0
      %1393 = vmatpush1.xpose.msra.mxu0 0.0
      %1394 = vmatprep.subr.mxu0 0.0
      %1395 = vmatpush1.xpose.msra.mxu0 0.0
      %1396 = vmatprep.subr.mxu0 0.0
      %1397 = vmatpush1.xpose.msra.mxu0 0.0
      %1398 = vmatprep.subr.mxu0 0.0
      %1399 = vmatpush1.xpose.msra.mxu0 0.0
      %1400 = vmatprep.mubr.f32.mxu0 0.0
      %1401 = vmatmul.mubr.f32.gmra.mrb[0].mxu0 %v1330
      %v1402 = vpop.f32.mrb[0].mxu0
      %v1403 = vadd.f32 0.0, %v1402
      %v1404 = vpop.f32.mrb[0].mxu0
      %1405 = vdwg.mxu0
      %v1406 = vsel %vm880, %v1403, -inf
      %1407 = vmax.xlane.f32.xlu0 %v1406
      %v1408 = vpop.xlane.xlu0 %1407
      %v1409 = vsub.f32 %v1403, %v1408
      %v1410 = vmul.f32 %v1409, 1.442695
      %v1411 = vpow.pop %v1410
      %v1412 = vsel %vm880, %v1411, 0.0
      %1413 = vadd.xlane.f32.xlu0 %v1412
      %v1414 = vpop.xlane.xlu0 %1413
      %v1415 = vrcp.pop %v1414
      %v1416 = vmul.f32 %v1411, %v1415
      %1417 = vrot.lane.b32.xlu0 %v792, 104
      %v1418 = vpop.permute.xlu0 %1417
      %1419 = vrot.lane.b32.xlu0 %v797, 104
      %v1420 = vpop.permute.xlu0 %1419
      %v1424 = vsel %vm880, %v1416, 0
      %1426 = vmatprep.subr.mxu0 0.0
      %1427 = vmatpush1.msra.mxu0 %v1418
      %1428 = vmatprep.subr.mxu0 0.0
      %1429 = vmatpush1.msra.mxu0 %v1420
      %1430 = vmatprep.subr.mxu0 0.0
      %1431 = vmatpush1.msra.mxu0 0.0
      %1432 = vmatprep.subr.mxu0 0.0
      %1433 = vmatpush1.msra.mxu0 0.0
      %1434 = vmatprep.subr.mxu0 0.0
      %1435 = vmatpush1.msra.mxu0 0.0
      %1436 = vmatprep.subr.mxu0 0.0
      %1437 = vmatpush1.msra.mxu0 0.0
      %1438 = vmatprep.subr.mxu0 0.0
      %1439 = vmatpush1.msra.mxu0 0.0
      %1440 = vmatprep.subr.mxu0 0.0
      %1441 = vmatpush1.msra.mxu0 0.0
      %1442 = vmatprep.subr.mxu0 0.0
      %1443 = vmatpush1.msra.mxu0 0.0
      %1444 = vmatprep.subr.mxu0 0.0
      %1445 = vmatpush1.msra.mxu0 0.0
      %1446 = vmatprep.subr.mxu0 0.0
      %1447 = vmatpush1.msra.mxu0 0.0
      %1448 = vmatprep.subr.mxu0 0.0
      %1449 = vmatpush1.msra.mxu0 0.0
      %1450 = vmatprep.subr.mxu0 0.0
      %1451 = vmatpush1.msra.mxu0 0.0
      %1452 = vmatprep.subr.mxu0 0.0
      %1453 = vmatpush1.msra.mxu0 0.0
      %1454 = vmatprep.subr.mxu0 0.0
      %1455 = vmatpush1.msra.mxu0 0.0
      %1456 = vmatprep.subr.mxu0 0.0
      %1457 = vmatpush1.msra.mxu0 0.0
      %1458 = vmatprep.subr.mxu0 0.0
      %1459 = vmatpush1.msra.mxu0 0.0
      %1460 = vmatprep.subr.mxu0 0.0
      %1461 = vmatpush1.msra.mxu0 0.0
      %1462 = vmatprep.subr.mxu0 0.0
      %1463 = vmatpush1.msra.mxu0 0.0
      %1464 = vmatprep.subr.mxu0 0.0
      %1465 = vmatpush1.msra.mxu0 0.0
      %1466 = vmatprep.subr.mxu0 0.0
      %1467 = vmatpush1.msra.mxu0 0.0
      %1468 = vmatprep.subr.mxu0 0.0
      %1469 = vmatpush1.msra.mxu0 0.0
      %1470 = vmatprep.subr.mxu0 0.0
      %1471 = vmatpush1.msra.mxu0 0.0
      %1472 = vmatprep.subr.mxu0 0.0
      %1473 = vmatpush1.msra.mxu0 0.0
      %1474 = vmatprep.subr.mxu0 0.0
      %1475 = vmatpush1.msra.mxu0 0.0
      %1476 = vmatprep.subr.mxu0 0.0
      %1477 = vmatpush1.msra.mxu0 0.0
      %1478 = vmatprep.subr.mxu0 0.0
      %1479 = vmatpush1.msra.mxu0 0.0
      %1480 = vmatprep.subr.mxu0 0.0
      %1481 = vmatpush1.msra.mxu0 0.0
      %1482 = vmatprep.subr.mxu0 0.0
      %1483 = vmatpush1.msra.mxu0 0.0
      %1484 = vmatprep.subr.mxu0 0.0
      %1485 = vmatpush1.msra.mxu0 0.0
      %1486 = vmatprep.subr.mxu0 0.0
      %1487 = vmatpush1.msra.mxu0 0.0
      %1488 = vmatprep.subr.mxu0 0.0
      %1489 = vmatpush1.msra.mxu0 0.0
      %1490 = vmatprep.mubr.f32.mxu0 0.0
      %1491 = vmatmul.mubr.f32.gmra.mrb[0].mxu0 %v1424
      %v1492 = vpop.f32.mrb[0].mxu0
      %v1493 = vadd.f32 0.0, %v1492
      %v1494 = vpop.f32.mrb[0].mxu0
      %1495 = vdwg.mxu0
      %1497 = vrot.lane.b32.xlu0 %v1493, 24
      %v1498 = vpop.permute.xlu0 %1497
      %vm1500 = vcmask 261312
      %1501 = vst.msk [vmem:[#allocation2] sm:$0xff] %vm1500, %v1498
      %v1502 = vld [vmem:[#allocation2] sm:$0xff]
      %v1503 = vld [vmem:[%s10] sm:$0xff]
      %v1504 = vld [vmem:[%s10 + $0x8] sm:$0xff]
      %v1505 = vld [vmem:[%s10 + $0x10] sm:$0xff]
      %v1506 = vld [vmem:[%s10 + $0x18] sm:$0xff]
      %v1508 = vsel %vm538, %v1502, 0
      %1510 = vmatprep.subr.mxu0 0.0
      %1511 = vmatpush1.msra.mxu0 %v1503
      %1512 = vmatprep.subr.mxu0 0.0
      %1513 = vmatpush1.msra.mxu0 %v1504
      %1514 = vmatprep.subr.mxu0 0.0
      %1515 = vmatpush1.msra.mxu0 %v1505
      %1516 = vmatprep.subr.mxu0 0.0
      %1517 = vmatpush1.msra.mxu0 %v1506
      %1518 = vmatprep.subr.mxu0 0.0
      %1519 = vmatpush1.msra.mxu0 0.0
      %1520 = vmatprep.subr.mxu0 0.0
      %1521 = vmatpush1.msra.mxu0 0.0
      %1522 = vmatprep.subr.mxu0 0.0
      %1523 = vmatpush1.msra.mxu0 0.0
      %1524 = vmatprep.subr.mxu0 0.0
      %1525 = vmatpush1.msra.mxu0 0.0
      %1526 = vmatprep.subr.mxu0 0.0
      %1527 = vmatpush1.msra.mxu0 0.0
      %1528 = vmatprep.subr.mxu0 0.0
      %1529 = vmatpush1.msra.mxu0 0.0
      %1530 = vmatprep.subr.mxu0 0.0
      %1531 = vmatpush1.msra.mxu0 0.0
      %1532 = vmatprep.subr.mxu0 0.0
      %1533 = vmatpush1.msra.mxu0 0.0
      %1534 = vmatprep.subr.mxu0 0.0
      %1535 = vmatpush1.msra.mxu0 0.0
      %1536 = vmatprep.subr.mxu0 0.0
      %1537 = vmatpush1.msra.mxu0 0.0
      %1538 = vmatprep.subr.mxu0 0.0
      %1539 = vmatpush1.msra.mxu0 0.0
      %1540 = vmatprep.subr.mxu0 0.0
      %1541 = vmatpush1.msra.mxu0 0.0
      %1542 = vmatprep.subr.mxu0 0.0
      %1543 = vmatpush1.msra.mxu0 0.0
      %1544 = vmatprep.subr.mxu0 0.0
      %1545 = vmatpush1.msra.mxu0 0.0
      %1546 = vmatprep.subr.mxu0 0.0
      %1547 = vmatpush1.msra.mxu0 0.0
      %1548 = vmatprep.subr.mxu0 0.0
      %1549 = vmatpush1.msra.mxu0 0.0
      %1550 = vmatprep.subr.mxu0 0.0
      %1551 = vmatpush1.msra.mxu0 0.0
      %1552 = vmatprep.subr.mxu0 0.0
      %1553 = vmatpush1.msra.mxu0 0.0
      %1554 = vmatprep.subr.mxu0 0.0
      %1555 = vmatpush1.msra.mxu0 0.0
      %1556 = vmatprep.subr.mxu0 0.0
      %1557 = vmatpush1.msra.mxu0 0.0
      %1558 = vmatprep.subr.mxu0 0.0
      %1559 = vmatpush1.msra.mxu0 0.0
      %1560 = vmatprep.subr.mxu0 0.0
      %1561 = vmatpush1.msra.mxu0 0.0
      %1562 = vmatprep.subr.mxu0 0.0
      %1563 = vmatpush1.msra.mxu0 0.0
      %1564 = vmatprep.subr.mxu0 0.0
      %1565 = vmatpush1.msra.mxu0 0.0
      %1566 = vmatprep.subr.mxu0 0.0
      %1567 = vmatpush1.msra.mxu0 0.0
      %1568 = vmatprep.subr.mxu0 0.0
      %1569 = vmatpush1.msra.mxu0 0.0
      %1570 = vmatprep.subr.mxu0 0.0
      %1571 = vmatpush1.msra.mxu0 0.0
      %1572 = vmatprep.subr.mxu0 0.0
      %1573 = vmatpush1.msra.mxu0 0.0
      %1574 = vmatprep.mubr.f32.mxu0 0.0
      %1575 = vmatmul.mubr.f32.gmra.mrb[0].mxu0 %v1508
      %v1576 = vpop.f32.mrb[0].mxu0
      %v1577 = vadd.f32 0.0, %v1576
      %v1578 = vpop.f32.mrb[0].mxu0
      %1579 = vdwg.mxu0
      %v1580 = vadd.f32 %v524, %v1577
      %v1581 = vld [vmem:[%s11] sm:$0x1]
      %v1583 = vlaneseq
      %v1584 = vshrl.u32 %v1583, 7
      %v1585 = vsub.s32 0, %v1584
      %v1586 = vrot.slane %v1581, %v1585
      %v1588 = vadd.f32 %v1580, %v1586
      %v1589 = vsel %vm538, %v1588, 0.0
      %1590 = vadd.xlane.f32.xlu0 %v1589
      %v1591 = vpop.xlane.xlu0 %1590
      %v1592 = vrcp.pop 32.0
      %v1593 = vmul.f32 %v1591, %v1592
      %v1594 = vsub.f32 %v1588, %v1593
      %v1595 = vmul.f32 %v1594, %v1594
      %v1596 = vsel %vm538, %v1595, 0.0
      %1597 = vadd.xlane.f32.xlu0 %v1596
      %v1598 = vpop.xlane.xlu0 %1597
      %v1599 = vmul.f32 %v1598, %v1592
      %v1600 = vadd.f32 %v1599, 1e-05
      %v1601 = vrsqrt.pop %v1600
      %v1602 = vmul.f32 %v1594, %v1601
      %v1603 = vld [vmem:[%s12] sm:$0x1]
      %v1605 = vlaneseq
      %v1606 = vshrl.u32 %v1605, 7
      %v1607 = vsub.s32 0, %v1606
      %v1608 = vrot.slane %v1603, %v1607
      %v1610 = vmul.f32 %v1602, %v1608
      %v1611 = vld [vmem:[%s13] sm:$0x1]
      %v1613 = vlaneseq
      %v1614 = vshrl.u32 %v1613, 7
      %v1615 = vsub.s32 0, %v1614
      %v1616 = vrot.slane %v1611, %v1615
      %v1618 = vadd.f32 %v1610, %v1616
      %1619 = vst.msk [vmem:[%s523] sm:$0xff] %vm538, %v1618
      %p1620 = scmp.lt.s32.totalorder %s25, 1
      %s1621 = scalar_select %p1620, %s25, 1
      %s1622 = smul.addr %s1621, 8
      %s1623 = scalar_lea.vmem %s14, %s1622
      // Predicated region
      $region77: #{decoder_layer_forward.3} parent=75 // pred_check
        %p1624 = pneg %p357
      $region78: #{decoder_layer_forward.3} parent=75 // pred_check_branch
        %1626 = sbr.rel (%p1624) target = $region80
      $region79: #{decoder_layer_forward.3} parent=75 // pred_region
        _
      $region80: #{decoder_layer_forward.3} parent=75 // pred_fallthru
        _
    $region76: #{decoder_layer_forward.3} parent=5 // pred_fallthru
      _
    %p1627 = scmp.le.s32.totalorder 2, %s20
    // Predicated region
    $region81: #{decoder_layer_forward.3} parent=5 // pred_check
      %p1628 = pneg %p1627
    $region82: #{decoder_layer_forward.3} parent=5 // pred_check_branch
      %1630 = sbr.rel (%p1628) target = $region84
    $region83: #{decoder_layer_forward.3} parent=5 // pred_region
      %s1631 = ssub.s32 %s20, 2
      // Predicated region
      $region85: #{decoder_layer_forward.3} parent=83 // pred_check
        %p1632 = pneg %p363
      $region86: #{decoder_layer_forward.3} parent=83 // pred_check_branch
        %1634 = sbr.rel (%p1632) target = $region88
      $region87: #{decoder_layer_forward.3} parent=83 // pred_region
        %p1635 = scmp.lt.s32.totalorder %s26, 1
        %s1636 = scalar_select %p1635, %s26, 1
        %s1637 = smul.addr %s1636, 8
        %s1638 = scalar_lea.vmem %s14, %s1637
      $region88: #{decoder_layer_forward.3} parent=83 // pred_fallthru
        _
    $region84: #{decoder_layer_forward.3} parent=5 // pred_fallthru
      _
  $region6: #{decoder_layer_forward.3} parent=0 // loop_footer
    %s24 = sadd.s32 1, %s20
  $region7: #{decoder_layer_forward.3} parent=0 // loop_footer_branch
    %19 = sbr.rel target = $region3
  $region8: #{decoder_layer_forward.3} parent=0 // loop_exit
    _

</llo_original>
